<compile_context>
chip_gen: v5e
topology: v5e:2x2
jax: 0.10.0
libtpu: 0.0.40
codegen_flags: <defaults>
</compile_context>

<pallas_src>
import jax
import jax.numpy as jnp
from jax.experimental import pallas as pl
from jax.experimental.pallas import tpu as pltpu

LANE = 128


def _round_up(n, m):
    return ((n + m - 1) // m) * m


def _pad2(a, rows, cols):
    return jnp.pad(a, ((0, rows - a.shape[0]), (0, cols - a.shape[1])))


# -----------------------------------------------------------------------------
# Fused kernel: 3x SAGEConv('mean') -> in-kernel edge gather -> predictor MLP
# -----------------------------------------------------------------------------
def _sage_fused_kernel(adj_ref, x_ref, w_ref, b_ref, idx_ref, o_ref):
    n_pad = adj_ref.shape[1]          # padded node count (lane-dense)
    f_p = x_ref.shape[1]              # padded input feature dim
    h_p = b_ref.shape[1]              # padded hidden dim
    e2 = idx_ref.shape[0]             # 2 * padded edge count (src block + dst block)
    e_pad = e2 // 2

    b_all = b_ref[...]                # (8, h_p) f32: [b1, b2, b3, pb1, pb2, 0, 0, 0]

    def sage_layer(a_bf, h, w_off, k_rows, bias, relu):
        # a_bf: (n_pad, n_pad) bf16 row-normalized adjacency -> 'mean' aggregation.
        # h:    (n_pad, F) f32. Rows beyond the real dst count carry junk, but they
        #       are only ever consumed through zero adjacency columns or one-hot
        #       selectors over the real rows, so results are unaffected.
        h_neigh = jnp.dot(a_bf, h.astype(jnp.bfloat16),
                          preferred_element_type=jnp.float32)            # (n_pad, F)
        # fused self/neighbor projection: single K = 2*F matmul
        h_cat = jnp.concatenate([h, h_neigh], axis=-1)                    # (n_pad, 2F)
        w = w_ref[w_off:w_off + k_rows, :]                                # (2F, h_p) bf16
        out = jnp.dot(h_cat.astype(jnp.bfloat16), w,
                      preferred_element_type=jnp.float32) + bias
        if relu:
            out = jnp.maximum(out, 0.0)
        return out                                                        # f32

    h = x_ref[...]                                                        # (n_pad, f_p) f32
    off = 0
    h = sage_layer(adj_ref[0], h, off, 2 * f_p, b_all[0:1, :], True); off += 2 * f_p
    h = sage_layer(adj_ref[1], h, off, 2 * h_p, b_all[1:2, :], True); off += 2 * h_p
    h = sage_layer(adj_ref[2], h, off, 2 * h_p, b_all[2:3, :], False); off += 2 * h_p

    # ---- edge-endpoint gather: stacked src/dst one-hot selectors, one bf16 matmul
    ids = idx_ref[...]                                                    # (2E, 1) int32
    node_ids = jax.lax.broadcasted_iota(jnp.int32, (e2, n_pad), 1)
    sel = (ids == node_ids).astype(jnp.bfloat16)                          # exact 0/1 in bf16
    h_pair = jnp.dot(sel, h.astype(jnp.bfloat16),
                     preferred_element_type=jnp.float32)                  # (2E, h_p)
    e = h_pair[:e_pad, :] * h_pair[e_pad:, :]                             # (E, h_p) edge feats

    # ---- predictor MLP: Linear -> ReLU -> Linear -> ReLU -> Linear(H, 1) ----
    z = jnp.dot(e.astype(jnp.bfloat16), w_ref[off:off + h_p, :],
                preferred_element_type=jnp.float32) + b_all[3:4, :]
    z = jnp.maximum(z, 0.0)
    off += h_p
    z = jnp.dot(z.astype(jnp.bfloat16), w_ref[off:off + h_p, :],
                preferred_element_type=jnp.float32) + b_all[4:5, :]
    z = jnp.maximum(z, 0.0)
    off += h_p
    # final Linear(H,1) as a K-contraction emitting a lane-dense (1, E) score row
    # (bias pb3 is added in the wrapper after slicing).
    pw3 = w_ref[off:off + 16, :][0:1, :]                                  # (1, h_p) bf16
    scores = jax.lax.dot_general(
        pw3, z.astype(jnp.bfloat16), (((1,), (1,)), ((), ())),
        preferred_element_type=jnp.float32)                               # (1, E)
    o_ref[...] = scores


# -----------------------------------------------------------------------------
# One-time prep (hoisted out of the hot path): pad, stack, cast all parameters
# -----------------------------------------------------------------------------
def prepare_sage(blocks, layer_params, pred_params, in_size):
    assert len(blocks) == 3 and len(layer_params) == 3, "kernel is fused for 3 layers"
    hid = layer_params[0][0].shape[1]
    f_p = _round_up(in_size, LANE)
    h_p = _round_up(hid, LANE)
    n_pad = _round_up(max(max(a.shape[0], a.shape[1]) for a in blocks), LANE)

    # row-normalized adjacencies (normalization done in fp32 by the caller),
    # zero-padded to (n_pad, n_pad) -- mathematically neutral -- bf16 MXU operands.
    adj_slab = jnp.stack(
        [_pad2(a.astype(jnp.float32), n_pad, n_pad) for a in blocks]
    ).astype(jnp.bfloat16)

    # single bf16 weight slab: [wstack1; wstack2; wstack3; pw1; pw2; pw3_row]
    rows = []
    for l, (w_s, w_n, _) in enumerate(layer_params):
        d_in_p = f_p if l == 0 else h_p
        rows.append(jnp.concatenate(
            [_pad2(w_s.astype(jnp.float32), d_in_p, h_p),
             _pad2(w_n.astype(jnp.float32), d_in_p, h_p)], axis=0))
    w1, b1, w2, b2, w3, b3 = pred_params
    rows.append(_pad2(w1.astype(jnp.float32), h_p, h_p))
    rows.append(_pad2(w2.astype(jnp.float32), h_p, h_p))
    rows.append(_pad2(w3.astype(jnp.float32).T, 1, h_p))   # final layer as row vector
    w_slab = jnp.concatenate(rows, axis=0)
    w_slab = _pad2(w_slab, _round_up(w_slab.shape[0], 16), h_p).astype(jnp.bfloat16)

    # f32 bias slab: rows [b1, b2, b3, pb1, pb2], padded to one (8, h_p) tile
    b_rows = [_pad2(lp[2].astype(jnp.float32).reshape(1, -1), 1, h_p)
              for lp in layer_params]
    b_rows += [_pad2(b1.astype(jnp.float32).reshape(1, -1), 1, h_p),
               _pad2(b2.astype(jnp.float32).reshape(1, -1), 1, h_p)]
    b_slab = _pad2(jnp.concatenate(b_rows, axis=0), 8, h_p)

    return dict(adj=adj_slab, w=w_slab, b=b_slab,
                b3=b3.astype(jnp.float32).reshape(1, 1))


# -----------------------------------------------------------------------------
# Hot path: pad features, assemble edge-index slab, single pallas_call
# -----------------------------------------------------------------------------
def sage_forward(prepared, x, pos_edges, neg_edges):
    adj, w_slab, b_slab = prepared["adj"], prepared["w"], prepared["b"]
    n_pad = adj.shape[1]
    f_p = _round_up(x.shape[1], LANE)
    assert x.shape[0] <= n_pad

    x_p = jnp.pad(x.astype(jnp.float32),
                  ((0, n_pad - x.shape[0]), (0, f_p - x.shape[1])))

    pos_src, pos_dst = pos_edges
    neg_src, neg_dst = neg_edges
    n_pos, n_neg = pos_src.shape[0], neg_src.shape[0]
    n_tot = n_pos + n_neg
    e_pad = _round_up(max(n_tot, 1), LANE)
    # NOTE: padded edge slots default to node 0 (their scores are sliced away);
    # there is no in-kernel bounds check on src/dst indices.
    src_all = jnp.zeros((e_pad,), jnp.int32).at[:n_tot].set(
        jnp.concatenate([pos_src, neg_src]).astype(jnp.int32))
    dst_all = jnp.zeros((e_pad,), jnp.int32).at[:n_tot].set(
        jnp.concatenate([pos_dst, neg_dst]).astype(jnp.int32))
    idx = jnp.concatenate([src_all, dst_all]).reshape(2 * e_pad, 1)

    vmem = pl.BlockSpec(memory_space=pltpu.MemorySpace.VMEM)
    # TODO(synk): for multi-subgraph minibatches add a leading batch grid axis
    # with dimension_semantics=("parallel", ...) so v7x's two TensorCores are used.
    scores = pl.pallas_call(
        _sage_fused_kernel,
        out_shape=jax.ShapeDtypeStruct((1, e_pad), jnp.float32),
        in_specs=[vmem] * 5,
        out_specs=vmem,
    )(adj, x_p, w_slab, b_slab, idx)

    scores = scores + prepared["b3"]        # final Linear(H,1) bias folded here
    h_pos = scores[0, :n_pos].reshape(n_pos, 1)
    h_neg = scores[0, n_pos:n_tot].reshape(n_neg, 1)
    return h_pos, h_neg


# -----------------------------------------------------------------------------
# Deterministic parameter / graph construction
# -----------------------------------------------------------------------------
def make_block_adjacency(key, num_dst, num_src):
    """Dense row-normalized adjacency (num_dst, num_src); every dst has deg>=1."""
    adj = (jax.random.uniform(key, (num_dst, num_src)) < 0.3).astype(jnp.float32)
    eye = jnp.zeros((num_dst, num_src)).at[jnp.arange(num_dst),
                                           jnp.arange(num_dst)].set(1.0)
    adj = jnp.maximum(adj, eye)
    deg = jnp.sum(adj, axis=1, keepdims=True)
    return adj / deg          # normalization kept in fp32 (precision of 'mean')


def make_linear(key, fan_in, fan_out, scale=0.1):
    kw, kb = jax.random.split(key)
    w = scale * jax.random.normal(kw, (fan_in, fan_out), dtype=jnp.float32)
    b = scale * jax.random.normal(kb, (1, fan_out), dtype=jnp.float32)
    return w, b


# TODO(synk): the PyTorch `inference` method (layer-wise full-graph inference
# with a DataLoader) has no in-kernel equivalent and is not implemented here.

if __name__ == "__main__":
    key = jax.random.PRNGKey(0)
    in_size, hid_size, num_layers = 16, 32, 3

    # 3-hop neighbor blocks: 64 -> 32 -> 16 -> 8 nodes
    block_sizes = [(32, 64), (16, 32), (8, 16)]

    keys = jax.random.split(key, 16)
    x = jax.random.normal(keys[0], (64, in_size), dtype=jnp.float32)

    blocks = [make_block_adjacency(keys[1 + i], d, s)
              for i, (d, s) in enumerate(block_sizes)]

    # SAGEConv params: (W_self, W_neigh, bias) per layer
    layer_params = []
    dims = [in_size] + [hid_size] * num_layers
    for l in range(num_layers):
        ws, b = make_linear(keys[4 + 2 * l], dims[l], dims[l + 1])
        wn, _ = make_linear(keys[5 + 2 * l], dims[l], dims[l + 1])
        layer_params.append((ws, wn, b))

    # Predictor MLP params
    w1, b1 = make_linear(keys[10], hid_size, hid_size)
    w2, b2 = make_linear(keys[11], hid_size, hid_size)
    w3, b3 = make_linear(keys[12], hid_size, 1)
    pred_params = (w1, b1, w2, b2, w3, b3)

    # positive / negative edge endpoint indices into the 8 final dst nodes
    num_final = block_sizes[-1][0]
    pos_src = jax.random.randint(keys[13], (8,), 0, num_final)
    pos_dst = jax.random.randint(keys[14], (8,), 0, num_final)
    neg_src = jax.random.randint(keys[15], (8,), 0, num_final)
    neg_dst = (neg_src + 3) % num_final

    # one-time prep (off the hot path); the per-step forward is the jitted part.
    prepared = jax.block_until_ready(
        prepare_sage(blocks, layer_params, pred_params, in_size))
    fwd = jax.jit(sage_forward)

    h_pos, h_neg = fwd(prepared, x, (pos_src, pos_dst), (neg_src, neg_dst))
    jax.block_until_ready((h_pos, h_neg))

    assert h_pos.shape == (8, 1) and h_neg.shape == (8, 1)
    assert bool(jnp.all(jnp.isfinite(h_pos))) and bool(jnp.all(jnp.isfinite(h_neg)))
    print("KERNEL_OK")
</pallas_src>

<mosaic_0001>
module attributes {stable_mosaic.version = 11 : i64} {
  func.func @_sage_fused_kernel(%arg0: memref<3x128x128xbf16, #tpu.memory_space<vmem>>, %arg1: memref<128x128xf32, #tpu.memory_space<vmem>>, %arg2: memref<1040x128xbf16, #tpu.memory_space<vmem>>, %arg3: memref<8x128xf32, #tpu.memory_space<vmem>>, %arg4: memref<256x1xi32, #tpu.memory_space<vmem>>, %arg5: memref<1x128xf32, #tpu.memory_space<vmem>>) attributes {dimension_semantics = [], scalar_prefetch = 0 : i64, scratch_operands = 0 : i64, tpu.core_type = #tpu.core_type<tc>} {
    %c0 = arith.constant 0 : index
    %c0_0 = arith.constant 0 : index
    %0 = vector.load %arg3[%c0, %c0_0] : memref<8x128xf32, #tpu.memory_space<vmem>>, vector<8x128xf32>
    %c0_1 = arith.constant 0 : index
    %c0_2 = arith.constant 0 : index
    %1 = vector.load %arg1[%c0_1, %c0_2] : memref<128x128xf32, #tpu.memory_space<vmem>>, vector<128x128xf32>
    %c0_3 = arith.constant 0 : index
    %c0_4 = arith.constant 0 : index
    %c0_5 = arith.constant 0 : index
    %2 = vector.load %arg0[%c0_3, %c0_4, %c0_5] : memref<3x128x128xbf16, #tpu.memory_space<vmem>>, vector<1x128x128xbf16>
    %3 = vector.shape_cast %2 : vector<1x128x128xbf16> to vector<128x128xbf16>
    %4 = vector.extract_strided_slice %0 {offsets = [0, 0], sizes = [1, 128], strides = [1, 1]} : vector<8x128xf32> to vector<1x128xf32>
    %5 = arith.truncf %1 : vector<128x128xf32> to vector<128x128xbf16>
    %cst = arith.constant dense<0.000000e+00> : vector<128x128xf32>
    %6 = tpu.matmul %3, %5, %cst {dimension_numbers = #tpu.dot_dimension_numbers<[1], [0], [0], [1], [0, 0, 1, 1], [], []>} : vector<128x128xbf16>, vector<128x128xbf16>, vector<128x128xf32> -> vector<128x128xf32>
    %7 = tpu.concatenate %1, %6 in 1 : vector<128x128xf32>, vector<128x128xf32> -> vector<128x256xf32>
    %c0_6 = arith.constant 0 : index
    %c0_7 = arith.constant 0 : index
    %8 = vector.load %arg2[%c0_6, %c0_7] : memref<1040x128xbf16, #tpu.memory_space<vmem>>, vector<256x128xbf16>
    %9 = arith.truncf %7 : vector<128x256xf32> to vector<128x256xbf16>
    %cst_8 = arith.constant dense<0.000000e+00> : vector<128x128xf32>
    %10 = tpu.matmul %9, %8, %cst_8 {dimension_numbers = #tpu.dot_dimension_numbers<[1], [0], [0], [1], [0, 0, 1, 1], [], []>} : vector<128x256xbf16>, vector<256x128xbf16>, vector<128x128xf32> -> vector<128x128xf32>
    %11 = vector.broadcast %4 : vector<1x128xf32> to vector<128x128xf32>
    %12 = arith.addf %10, %11 : vector<128x128xf32>
    %cst_9 = arith.constant 0.000000e+00 : f32
    %13 = vector.broadcast %cst_9 : f32 to vector<128x128xf32>
    %14 = arith.maximumf %12, %13 : vector<128x128xf32>
    %c1 = arith.constant 1 : index
    %c0_10 = arith.constant 0 : index
    %c0_11 = arith.constant 0 : index
    %15 = vector.load %arg0[%c1, %c0_10, %c0_11] : memref<3x128x128xbf16, #tpu.memory_space<vmem>>, vector<1x128x128xbf16>
    %16 = vector.shape_cast %15 : vector<1x128x128xbf16> to vector<128x128xbf16>
    %17 = vector.extract_strided_slice %0 {offsets = [1, 0], sizes = [1, 128], strides = [1, 1]} : vector<8x128xf32> to vector<1x128xf32>
    %18 = arith.truncf %14 : vector<128x128xf32> to vector<128x128xbf16>
    %cst_12 = arith.constant dense<0.000000e+00> : vector<128x128xf32>
    %19 = tpu.matmul %16, %18, %cst_12 {dimension_numbers = #tpu.dot_dimension_numbers<[1], [0], [0], [1], [0, 0, 1, 1], [], []>} : vector<128x128xbf16>, vector<128x128xbf16>, vector<128x128xf32> -> vector<128x128xf32>
    %20 = tpu.concatenate %14, %19 in 1 : vector<128x128xf32>, vector<128x128xf32> -> vector<128x256xf32>
    %c256 = arith.constant 256 : index
    %c0_13 = arith.constant 0 : index
    %21 = vector.load %arg2[%c256, %c0_13] : memref<1040x128xbf16, #tpu.memory_space<vmem>>, vector<256x128xbf16>
    %22 = arith.truncf %20 : vector<128x256xf32> to vector<128x256xbf16>
    %cst_14 = arith.constant dense<0.000000e+00> : vector<128x128xf32>
    %23 = tpu.matmul %22, %21, %cst_14 {dimension_numbers = #tpu.dot_dimension_numbers<[1], [0], [0], [1], [0, 0, 1, 1], [], []>} : vector<128x256xbf16>, vector<256x128xbf16>, vector<128x128xf32> -> vector<128x128xf32>
    %24 = vector.broadcast %17 : vector<1x128xf32> to vector<128x128xf32>
    %25 = arith.addf %23, %24 : vector<128x128xf32>
    %cst_15 = arith.constant 0.000000e+00 : f32
    %26 = vector.broadcast %cst_15 : f32 to vector<128x128xf32>
    %27 = arith.maximumf %25, %26 : vector<128x128xf32>
    %c2 = arith.constant 2 : index
    %c0_16 = arith.constant 0 : index
    %c0_17 = arith.constant 0 : index
    %28 = vector.load %arg0[%c2, %c0_16, %c0_17] : memref<3x128x128xbf16, #tpu.memory_space<vmem>>, vector<1x128x128xbf16>
    %29 = vector.shape_cast %28 : vector<1x128x128xbf16> to vector<128x128xbf16>
    %30 = vector.extract_strided_slice %0 {offsets = [2, 0], sizes = [1, 128], strides = [1, 1]} : vector<8x128xf32> to vector<1x128xf32>
    %31 = arith.truncf %27 : vector<128x128xf32> to vector<128x128xbf16>
    %cst_18 = arith.constant dense<0.000000e+00> : vector<128x128xf32>
    %32 = tpu.matmul %29, %31, %cst_18 {dimension_numbers = #tpu.dot_dimension_numbers<[1], [0], [0], [1], [0, 0, 1, 1], [], []>} : vector<128x128xbf16>, vector<128x128xbf16>, vector<128x128xf32> -> vector<128x128xf32>
    %33 = tpu.concatenate %27, %32 in 1 : vector<128x128xf32>, vector<128x128xf32> -> vector<128x256xf32>
    %c512 = arith.constant 512 : index
    %c0_19 = arith.constant 0 : index
    %34 = vector.load %arg2[%c512, %c0_19] : memref<1040x128xbf16, #tpu.memory_space<vmem>>, vector<256x128xbf16>
    %35 = arith.truncf %33 : vector<128x256xf32> to vector<128x256xbf16>
    %cst_20 = arith.constant dense<0.000000e+00> : vector<128x128xf32>
    %36 = tpu.matmul %35, %34, %cst_20 {dimension_numbers = #tpu.dot_dimension_numbers<[1], [0], [0], [1], [0, 0, 1, 1], [], []>} : vector<128x256xbf16>, vector<256x128xbf16>, vector<128x128xf32> -> vector<128x128xf32>
    %37 = vector.broadcast %30 : vector<1x128xf32> to vector<128x128xf32>
    %38 = arith.addf %36, %37 : vector<128x128xf32>
    %c0_21 = arith.constant 0 : index
    %c0_22 = arith.constant 0 : index
    %39 = vector.load %arg4[%c0_21, %c0_22] : memref<256x1xi32, #tpu.memory_space<vmem>>, vector<256x1xi32>
    %40 = tpu.iota {dimensions = array<i32: 1>} : vector<256x128xi32>
    %41 = vector.broadcast %39 : vector<256x1xi32> to vector<256x128xi32>
    %42 = arith.cmpi eq, %41, %40 : vector<256x128xi32>
    %43 = arith.extui %42 : vector<256x128xi1> to vector<256x128xi32>
    %44 = arith.sitofp %43 : vector<256x128xi32> to vector<256x128xf32>
    %45 = arith.truncf %44 : vector<256x128xf32> to vector<256x128xbf16>
    %46 = arith.truncf %38 : vector<128x128xf32> to vector<128x128xbf16>
    %cst_23 = arith.constant dense<0.000000e+00> : vector<256x128xf32>
    %47 = tpu.matmul %45, %46, %cst_23 {dimension_numbers = #tpu.dot_dimension_numbers<[1], [0], [0], [1], [0, 0, 1, 1], [], []>} : vector<256x128xbf16>, vector<128x128xbf16>, vector<256x128xf32> -> vector<256x128xf32>
    %48 = vector.extract_strided_slice %47 {offsets = [0, 0], sizes = [128, 128], strides = [1, 1]} : vector<256x128xf32> to vector<128x128xf32>
    %49 = vector.extract_strided_slice %47 {offsets = [128, 0], sizes = [128, 128], strides = [1, 1]} : vector<256x128xf32> to vector<128x128xf32>
    %50 = arith.mulf %48, %49 : vector<128x128xf32>
    %51 = arith.truncf %50 : vector<128x128xf32> to vector<128x128xbf16>
    %c768 = arith.constant 768 : index
    %c0_24 = arith.constant 0 : index
    %52 = vector.load %arg2[%c768, %c0_24] : memref<1040x128xbf16, #tpu.memory_space<vmem>>, vector<128x128xbf16>
    %cst_25 = arith.constant dense<0.000000e+00> : vector<128x128xf32>
    %53 = tpu.matmul %51, %52, %cst_25 {dimension_numbers = #tpu.dot_dimension_numbers<[1], [0], [0], [1], [0, 0, 1, 1], [], []>} : vector<128x128xbf16>, vector<128x128xbf16>, vector<128x128xf32> -> vector<128x128xf32>
    %54 = vector.extract_strided_slice %0 {offsets = [3, 0], sizes = [1, 128], strides = [1, 1]} : vector<8x128xf32> to vector<1x128xf32>
    %55 = vector.broadcast %54 : vector<1x128xf32> to vector<128x128xf32>
    %56 = arith.addf %53, %55 : vector<128x128xf32>
    %cst_26 = arith.constant 0.000000e+00 : f32
    %57 = vector.broadcast %cst_26 : f32 to vector<128x128xf32>
    %58 = arith.maximumf %56, %57 : vector<128x128xf32>
    %59 = arith.truncf %58 : vector<128x128xf32> to vector<128x128xbf16>
    %c896 = arith.constant 896 : index
    %c0_27 = arith.constant 0 : index
    %60 = vector.load %arg2[%c896, %c0_27] : memref<1040x128xbf16, #tpu.memory_space<vmem>>, vector<128x128xbf16>
    %cst_28 = arith.constant dense<0.000000e+00> : vector<128x128xf32>
    %61 = tpu.matmul %59, %60, %cst_28 {dimension_numbers = #tpu.dot_dimension_numbers<[1], [0], [0], [1], [0, 0, 1, 1], [], []>} : vector<128x128xbf16>, vector<128x128xbf16>, vector<128x128xf32> -> vector<128x128xf32>
    %62 = vector.extract_strided_slice %0 {offsets = [4, 0], sizes = [1, 128], strides = [1, 1]} : vector<8x128xf32> to vector<1x128xf32>
    %63 = vector.broadcast %62 : vector<1x128xf32> to vector<128x128xf32>
    %64 = arith.addf %61, %63 : vector<128x128xf32>
    %cst_29 = arith.constant 0.000000e+00 : f32
    %65 = vector.broadcast %cst_29 : f32 to vector<128x128xf32>
    %66 = arith.maximumf %64, %65 : vector<128x128xf32>
    %c1024 = arith.constant 1024 : index
    %c0_30 = arith.constant 0 : index
    %67 = vector.load %arg2[%c1024, %c0_30] : memref<1040x128xbf16, #tpu.memory_space<vmem>>, vector<16x128xbf16>
    %68 = vector.extract_strided_slice %67 {offsets = [0, 0], sizes = [1, 128], strides = [1, 1]} : vector<16x128xbf16> to vector<1x128xbf16>
    %69 = arith.truncf %66 : vector<128x128xf32> to vector<128x128xbf16>
    %cst_31 = arith.constant dense<0.000000e+00> : vector<1x128xf32>
    %70 = tpu.matmul %68, %69, %cst_31 {dimension_numbers = #tpu.dot_dimension_numbers<[1], [1], [0], [0], [0, 0, 1, 0], [], []>} : vector<1x128xbf16>, vector<128x128xbf16>, vector<1x128xf32> -> vector<1x128xf32>
    %c0_32 = arith.constant 0 : index
    %c0_33 = arith.constant 0 : index
    %71 = vector.load %arg5[%c0_32, %c0_33] : memref<1x128xf32, #tpu.memory_space<vmem>>, vector<1x128xf32>
    tpu.vector_store %arg5[%c0_32, %c0_33], %70 {strides = array<i32>} : memref<1x128xf32, #tpu.memory_space<vmem>>, vector<1x128xf32>,
    return
  }
}

</mosaic_0001>

<llo_original>
// kernel: sage_forward.1
$region0: #{sage_forward.1}
  #allocation0 [shape = 'u32[]', space=smem, size = 0x4, offset = 0x4, fixed_abs, tag = 'smem constant byte address 0x4 - core index']
  #allocation1 [shape = 'u32[72,128]{1,0:T(1,128)}', space=vmem, size = 0x9000, scoped, tag = 'internal scratch']
  %s0 = inlined_call_operand.vmem [shape: bf16[3,128,128], index: 0, kind: input, shape index: {}]
  %s1 = inlined_call_operand.vmem [shape: f32[128,128], index: 1, kind: input, shape index: {}]
  %s2 = inlined_call_operand.hbm [shape: bf16[1040,128], index: 2, kind: input, shape index: {}]
  %s3 = inlined_call_operand.vmem [shape: f32[8,128], index: 3, kind: input, shape index: {}]
  %s4 = inlined_call_operand.vmem [shape: s32[256,1], index: 4, kind: input, shape index: {}]
  %s5 = inlined_call_operand.vmem [shape: f32[1,128], index: 5, kind: output, shape index: {}]
  %s6 = sld [smem:[#allocation0]]
  $region34: #{sage_forward.1} parent=0
    _
  %s8 = ssub.s32 1, %s6
  %s9 = scalar_select 0, %s8, %s6
  $region1: #{sage_forward.1} parent=0
    #allocation2 [shape = 'u8[266240]{0}', space=vmem, size = 0x41000, scoped, tag = 'input window, operand 2, single buffered']
    #allocation3 [shape = 's32[1]{0}', space=sflag, size = 0x4, scoped, tag = 'scoped memory for sage_forward.1']
    %10 = vsyncpa [#allocation3], 0
    // Predicated region
    $region2: #{sage_forward.1} parent=1 // pred_check
      _
    $region3: #{sage_forward.1} parent=1 // pred_check_branch
      %12 = sbr.rel (0) target = $region5
    $region4: #{sage_forward.1} parent=1 // pred_region
      _
    $region5: #{sage_forward.1} parent=1 // pred_fallthru
      _
    // Predicated region
    $region6: #{sage_forward.1} parent=1 // pred_check
      _
    $region7: #{sage_forward.1} parent=1 // pred_check_branch
      %14 = sbr.rel (0) target = $region9
    $region8: #{sage_forward.1} parent=1 // pred_region
      _
    $region9: #{sage_forward.1} parent=1 // pred_fallthru
      _
    // Predicated region
    $region10: #{sage_forward.1} parent=1 // pred_check
      _
    $region11: #{sage_forward.1} parent=1 // pred_check_branch
      %16 = sbr.rel (0) target = $region13
    $region12: #{sage_forward.1} parent=1 // pred_region
      %18 = vsyncadd [#allocation3], 0
      %s19 = sshll.u32 %s2, 4
      %s20 = int_to_ptr.hbm [resolvable:$true] %s19
      %s21 = sshll.u32 [#allocation2], 4
      %s22 = int_to_ptr.vmem [resolvable:$true] %s21
      %27 = dma.hbm_to_vmem [thread:$0]  %s20, 8320, %s22, [#allocation3], 64, 64, 4
    $region13: #{sage_forward.1} parent=1 // pred_fallthru
      _
    // Predicated region
    $region14: #{sage_forward.1} parent=1 // pred_check
      _
    $region15: #{sage_forward.1} parent=1 // pred_check_branch
      %29 = sbr.rel (0) target = $region17
    $region16: #{sage_forward.1} parent=1 // pred_region
      _
    $region17: #{sage_forward.1} parent=1 // pred_fallthru
      _
    // Predicated region
    $region18: #{sage_forward.1} parent=1 // pred_check
      _
    $region19: #{sage_forward.1} parent=1 // pred_check_branch
      %31 = sbr.rel (0) target = $region21
    $region20: #{sage_forward.1} parent=1 // pred_region
      _
    $region21: #{sage_forward.1} parent=1 // pred_fallthru
      _
    // Predicated region
    $region22: #{sage_forward.1} parent=1 // pred_check
      _
    $region23: #{sage_forward.1} parent=1 // pred_check_branch
      %33 = sbr.rel (0) target = $region25
    $region24: #{sage_forward.1} parent=1 // pred_region
      %35 = dma.done [#allocation3], 8320
    $region25: #{sage_forward.1} parent=1 // pred_fallthru
      _
    %v36 = vld [vmem:[%s3] sm:$0xff]
    %v37 = vld [vmem:[%s1] sm:$0xff]
    %v38 = vld [vmem:[%s1 + $0x8] sm:$0xff]
    %v39 = vld [vmem:[%s1 + $0x10] sm:$0xff]
    %v40 = vld [vmem:[%s1 + $0x18] sm:$0xff]
    %v41 = vld [vmem:[%s1 + $0x20] sm:$0xff]
    %v42 = vld [vmem:[%s1 + $0x28] sm:$0xff]
    %v43 = vld [vmem:[%s1 + $0x30] sm:$0xff]
    %v44 = vld [vmem:[%s1 + $0x38] sm:$0xff]
    %v45 = vld [vmem:[%s1 + $0x40] sm:$0xff]
    %v46 = vld [vmem:[%s1 + $0x48] sm:$0xff]
    %v47 = vld [vmem:[%s1 + $0x50] sm:$0xff]
    %v48 = vld [vmem:[%s1 + $0x58] sm:$0xff]
    %v49 = vld [vmem:[%s1 + $0x60] sm:$0xff]
    %v50 = vld [vmem:[%s1 + $0x68] sm:$0xff]
    %v51 = vld [vmem:[%s1 + $0x70] sm:$0xff]
    %v52 = vld [vmem:[%s1 + $0x78] sm:$0xff]
    %v53 = vld [vmem:[%s0] sm:$0xf]
    %v54 = vld [vmem:[%s0 + $0x4] sm:$0xf]
    %v55 = vld [vmem:[%s0 + $0x8] sm:$0xf]
    %v56 = vld [vmem:[%s0 + $0xc] sm:$0xf]
    %v57 = vld [vmem:[%s0 + $0x10] sm:$0xf]
    %v58 = vld [vmem:[%s0 + $0x14] sm:$0xf]
    %v59 = vld [vmem:[%s0 + $0x18] sm:$0xf]
    %v60 = vld [vmem:[%s0 + $0x1c] sm:$0xf]
    %v61 = vld [vmem:[%s0 + $0x20] sm:$0xf]
    %v62 = vld [vmem:[%s0 + $0x24] sm:$0xf]
    %v63 = vld [vmem:[%s0 + $0x28] sm:$0xf]
    %v64 = vld [vmem:[%s0 + $0x2c] sm:$0xf]
    %v65 = vld [vmem:[%s0 + $0x30] sm:$0xf]
    %v66 = vld [vmem:[%s0 + $0x34] sm:$0xf]
    %v67 = vld [vmem:[%s0 + $0x38] sm:$0xf]
    %v68 = vld [vmem:[%s0 + $0x3c] sm:$0xf]
    %v69 = vpack.c.bf16 %v38, %v37
    %v70 = vpack.c.bf16 %v40, %v39
    %v71 = vpack.c.bf16 %v42, %v41
    %v72 = vpack.c.bf16 %v44, %v43
    %v73 = vpack.c.bf16 %v46, %v45
    %v74 = vpack.c.bf16 %v48, %v47
    %v75 = vpack.c.bf16 %v50, %v49
    %v76 = vpack.c.bf16 %v52, %v51
    %v93 = vunpack.c.l.b16 %v53
    %v94 = vunpack.c.l.b16 %v54
    %v95 = vunpack.c.l.b16 %v55
    %v96 = vunpack.c.l.b16 %v56
    %v97 = vunpack.c.l.b16 %v57
    %v98 = vunpack.c.l.b16 %v58
    %v99 = vunpack.c.l.b16 %v59
    %v100 = vunpack.c.l.b16 %v60
    %v101 = vunpack.c.l.b16 %v61
    %v102 = vunpack.c.l.b16 %v62
    %v103 = vunpack.c.l.b16 %v63
    %v104 = vunpack.c.l.b16 %v64
    %v105 = vunpack.c.l.b16 %v65
    %v106 = vunpack.c.l.b16 %v66
    %v107 = vunpack.c.l.b16 %v67
    %v108 = vunpack.c.l.b16 %v68
    %v109 = vpack.c.b16 %v94, %v93
    %v110 = vpack.c.b16 %v96, %v95
    %v111 = vpack.c.b16 %v98, %v97
    %v112 = vpack.c.b16 %v100, %v99
    %v113 = vpack.c.b16 %v102, %v101
    %v114 = vpack.c.b16 %v104, %v103
    %v115 = vpack.c.b16 %v106, %v105
    %v116 = vpack.c.b16 %v108, %v107
    %125 = vmatpush.bf16.msra.mxu0 %v76
    %126 = vmatpush.bf16.msra.mxu0 %v75
    %127 = vmatpush.bf16.msra.mxu0 %v74
    %128 = vmatpush.bf16.msra.mxu0 %v73
    %129 = vmatpush.bf16.msra.mxu0 %v72
    %130 = vmatpush.bf16.msra.mxu0 %v71
    %131 = vmatpush.bf16.msra.mxu0 %v70
    %132 = vmatpush.bf16.msra.mxu0 %v69
    %133 = vmatmul.bf16.gmra.mxu0 %v109
    %v134 = vpop.f32.mrf.mxu0
    %v135 = vadd.f32 0.0, %v134
    %v136 = vpop.f32.mrf.mxu0
    %v137 = vadd.f32 0.0, %v136
    %138 = vmatmul.bf16.gmra.mxu0 %v110
    %v139 = vpop.f32.mrf.mxu0
    %v140 = vadd.f32 0.0, %v139
    %v141 = vpop.f32.mrf.mxu0
    %v142 = vadd.f32 0.0, %v141
    %143 = vmatmul.bf16.gmra.mxu0 %v111
    %v144 = vpop.f32.mrf.mxu0
    %v145 = vadd.f32 0.0, %v144
    %v146 = vpop.f32.mrf.mxu0
    %v147 = vadd.f32 0.0, %v146
    %148 = vmatmul.bf16.gmra.mxu0 %v112
    %v149 = vpop.f32.mrf.mxu0
    %v150 = vadd.f32 0.0, %v149
    %v151 = vpop.f32.mrf.mxu0
    %v152 = vadd.f32 0.0, %v151
    %153 = vmatmul.bf16.gmra.mxu0 %v113
    %v154 = vpop.f32.mrf.mxu0
    %v155 = vadd.f32 0.0, %v154
    %v156 = vpop.f32.mrf.mxu0
    %v157 = vadd.f32 0.0, %v156
    %158 = vmatmul.bf16.gmra.mxu0 %v114
    %v159 = vpop.f32.mrf.mxu0
    %v160 = vadd.f32 0.0, %v159
    %v161 = vpop.f32.mrf.mxu0
    %v162 = vadd.f32 0.0, %v161
    %163 = vmatmul.bf16.gmra.mxu0 %v115
    %v164 = vpop.f32.mrf.mxu0
    %v165 = vadd.f32 0.0, %v164
    %v166 = vpop.f32.mrf.mxu0
    %v167 = vadd.f32 0.0, %v166
    %168 = vmatmul.bf16.gmra.mxu0 %v116
    %v169 = vpop.f32.mrf.mxu0
    %v170 = vadd.f32 0.0, %v169
    %v171 = vpop.f32.mrf.mxu0
    %v172 = vadd.f32 0.0, %v171
    %173 = vdwg.mxu0
    %v174 = vld [vmem:[#allocation2] sm:$0xf]
    %v175 = vld [vmem:[#allocation2 + $0x4] sm:$0xf]
    %v176 = vld [vmem:[#allocation2 + $0x8] sm:$0xf]
    %v177 = vld [vmem:[#allocation2 + $0xc] sm:$0xf]
    %v178 = vld [vmem:[#allocation2 + $0x10] sm:$0xf]
    %v179 = vld [vmem:[#allocation2 + $0x14] sm:$0xf]
    %v180 = vld [vmem:[#allocation2 + $0x18] sm:$0xf]
    %v181 = vld [vmem:[#allocation2 + $0x1c] sm:$0xf]
    %v182 = vld [vmem:[#allocation2 + $0x20] sm:$0xf]
    %v183 = vld [vmem:[#allocation2 + $0x24] sm:$0xf]
    %v184 = vld [vmem:[#allocation2 + $0x28] sm:$0xf]
    %v185 = vld [vmem:[#allocation2 + $0x2c] sm:$0xf]
    %v186 = vld [vmem:[#allocation2 + $0x30] sm:$0xf]
    %v187 = vld [vmem:[#allocation2 + $0x34] sm:$0xf]
    %v188 = vld [vmem:[#allocation2 + $0x38] sm:$0xf]
    %v189 = vld [vmem:[#allocation2 + $0x3c] sm:$0xf]
    %v190 = vld [vmem:[#allocation2 + $0x40] sm:$0xf]
    %v191 = vld [vmem:[#allocation2 + $0x44] sm:$0xf]
    %v192 = vld [vmem:[#allocation2 + $0x48] sm:$0xf]
    %v193 = vld [vmem:[#allocation2 + $0x4c] sm:$0xf]
    %v194 = vld [vmem:[#allocation2 + $0x50] sm:$0xf]
    %v195 = vld [vmem:[#allocation2 + $0x54] sm:$0xf]
    %v196 = vld [vmem:[#allocation2 + $0x58] sm:$0xf]
    %v197 = vld [vmem:[#allocation2 + $0x5c] sm:$0xf]
    %v198 = vld [vmem:[#allocation2 + $0x60] sm:$0xf]
    %v199 = vld [vmem:[#allocation2 + $0x64] sm:$0xf]
    %v200 = vld [vmem:[#allocation2 + $0x68] sm:$0xf]
    %v201 = vld [vmem:[#allocation2 + $0x6c] sm:$0xf]
    %v202 = vld [vmem:[#allocation2 + $0x70] sm:$0xf]
    %v203 = vld [vmem:[#allocation2 + $0x74] sm:$0xf]
    %v204 = vld [vmem:[#allocation2 + $0x78] sm:$0xf]
    %v205 = vld [vmem:[#allocation2 + $0x7c] sm:$0xf]
    %v206 = vpack.c.bf16 %v137, %v135
    %v207 = vpack.c.bf16 %v142, %v140
    %v208 = vpack.c.bf16 %v147, %v145
    %v209 = vpack.c.bf16 %v152, %v150
    %v210 = vpack.c.bf16 %v157, %v155
    %v211 = vpack.c.bf16 %v162, %v160
    %v212 = vpack.c.bf16 %v167, %v165
    %v213 = vpack.c.bf16 %v172, %v170
    %v214 = vperm.slane %v36, 0
    %v247 = vunpack.c.l.b16 %v174
    %v248 = vunpack.c.l.b16 %v175
    %v249 = vunpack.c.l.b16 %v176
    %v250 = vunpack.c.l.b16 %v177
    %v251 = vunpack.c.l.b16 %v178
    %v252 = vunpack.c.l.b16 %v179
    %v253 = vunpack.c.l.b16 %v180
    %v254 = vunpack.c.l.b16 %v181
    %v255 = vunpack.c.l.b16 %v182
    %v256 = vunpack.c.l.b16 %v183
    %v257 = vunpack.c.l.b16 %v184
    %v258 = vunpack.c.l.b16 %v185
    %v259 = vunpack.c.l.b16 %v186
    %v260 = vunpack.c.l.b16 %v187
    %v261 = vunpack.c.l.b16 %v188
    %v262 = vunpack.c.l.b16 %v189
    %v263 = vunpack.c.l.b16 %v190
    %v264 = vunpack.c.l.b16 %v191
    %v265 = vunpack.c.l.b16 %v192
    %v266 = vunpack.c.l.b16 %v193
    %v267 = vunpack.c.l.b16 %v194
    %v268 = vunpack.c.l.b16 %v195
    %v269 = vunpack.c.l.b16 %v196
    %v270 = vunpack.c.l.b16 %v197
    %v271 = vunpack.c.l.b16 %v198
    %v272 = vunpack.c.l.b16 %v199
    %v273 = vunpack.c.l.b16 %v200
    %v274 = vunpack.c.l.b16 %v201
    %v275 = vunpack.c.l.b16 %v202
    %v276 = vunpack.c.l.b16 %v203
    %v277 = vunpack.c.l.b16 %v204
    %v278 = vunpack.c.l.b16 %v205
    %v279 = vpack.c.b16 %v248, %v247
    %v280 = vpack.c.b16 %v250, %v249
    %v281 = vpack.c.b16 %v252, %v251
    %v282 = vpack.c.b16 %v254, %v253
    %v283 = vpack.c.b16 %v256, %v255
    %v284 = vpack.c.b16 %v258, %v257
    %v285 = vpack.c.b16 %v260, %v259
    %v286 = vpack.c.b16 %v262, %v261
    %v287 = vpack.c.b16 %v264, %v263
    %v288 = vpack.c.b16 %v266, %v265
    %v289 = vpack.c.b16 %v268, %v267
    %v290 = vpack.c.b16 %v270, %v269
    %v291 = vpack.c.b16 %v272, %v271
    %v292 = vpack.c.b16 %v274, %v273
    %v293 = vpack.c.b16 %v276, %v275
    %v294 = vpack.c.b16 %v278, %v277
    %311 = vmatpush.bf16.msra.mxu0 %v286
    %312 = vmatpush.bf16.msra.mxu0 %v285
    %313 = vmatpush.bf16.msra.mxu0 %v284
    %314 = vmatpush.bf16.msra.mxu0 %v283
    %315 = vmatpush.bf16.msra.mxu0 %v282
    %316 = vmatpush.bf16.msra.mxu0 %v281
    %317 = vmatpush.bf16.msra.mxu0 %v280
    %318 = vmatpush.bf16.msra.mxu0 %v279
    %319 = vmatmul.bf16.gmra.mxu0 %v69
    %v320 = vpop.f32.mrf.mxu0
    %v321 = vadd.f32 %v214, %v320
    %v322 = vpop.f32.mrf.mxu0
    %v323 = vadd.f32 %v214, %v322
    %324 = vmatmul.bf16.gmra.mxu0 %v70
    %v325 = vpop.f32.mrf.mxu0
    %v326 = vadd.f32 %v214, %v325
    %v327 = vpop.f32.mrf.mxu0
    %v328 = vadd.f32 %v214, %v327
    %329 = vmatmul.bf16.gmra.mxu0 %v71
    %v330 = vpop.f32.mrf.mxu0
    %v331 = vadd.f32 %v214, %v330
    %v332 = vpop.f32.mrf.mxu0
    %v333 = vadd.f32 %v214, %v332
    %334 = vmatmul.bf16.gmra.mxu0 %v72
    %v335 = vpop.f32.mrf.mxu0
    %v336 = vadd.f32 %v214, %v335
    %v337 = vpop.f32.mrf.mxu0
    %v338 = vadd.f32 %v214, %v337
    %339 = vmatmul.bf16.gmra.mxu0 %v73
    %v340 = vpop.f32.mrf.mxu0
    %v341 = vadd.f32 %v214, %v340
    %v342 = vpop.f32.mrf.mxu0
    %v343 = vadd.f32 %v214, %v342
    %344 = vmatmul.bf16.gmra.mxu0 %v74
    %v345 = vpop.f32.mrf.mxu0
    %v346 = vadd.f32 %v214, %v345
    %v347 = vpop.f32.mrf.mxu0
    %v348 = vadd.f32 %v214, %v347
    %349 = vmatmul.bf16.gmra.mxu0 %v75
    %v350 = vpop.f32.mrf.mxu0
    %v351 = vadd.f32 %v214, %v350
    %v352 = vpop.f32.mrf.mxu0
    %v353 = vadd.f32 %v214, %v352
    %354 = vmatmul.bf16.gmra.mxu0 %v76
    %v355 = vpop.f32.mrf.mxu0
    %v356 = vadd.f32 %v214, %v355
    %v357 = vpop.f32.mrf.mxu0
    %v358 = vadd.f32 %v214, %v357
    %359 = vdwg.mxu0
    %360 = vmatpush.bf16.msra.mxu0 %v294
    %361 = vmatpush.bf16.msra.mxu0 %v293
    %362 = vmatpush.bf16.msra.mxu0 %v292
    %363 = vmatpush.bf16.msra.mxu0 %v291
    %364 = vmatpush.bf16.msra.mxu0 %v290
    %365 = vmatpush.bf16.msra.mxu0 %v289
    %366 = vmatpush.bf16.msra.mxu0 %v288
    %367 = vmatpush.bf16.msra.mxu0 %v287
    %368 = vmatmul.bf16.gmra.mxu0 %v206
    %v369 = vpop.f32.mrf.mxu0
    %v370 = vadd.f32 %v321, %v369
    %v371 = vpop.f32.mrf.mxu0
    %v372 = vadd.f32 %v323, %v371
    %373 = vmatmul.bf16.gmra.mxu0 %v207
    %v374 = vpop.f32.mrf.mxu0
    %v375 = vadd.f32 %v326, %v374
    %v376 = vpop.f32.mrf.mxu0
    %v377 = vadd.f32 %v328, %v376
    %378 = vmatmul.bf16.gmra.mxu0 %v208
    %v379 = vpop.f32.mrf.mxu0
    %v380 = vadd.f32 %v331, %v379
    %v381 = vpop.f32.mrf.mxu0
    %v382 = vadd.f32 %v333, %v381
    %383 = vmatmul.bf16.gmra.mxu0 %v209
    %v384 = vpop.f32.mrf.mxu0
    %v385 = vadd.f32 %v336, %v384
    %v386 = vpop.f32.mrf.mxu0
    %v387 = vadd.f32 %v338, %v386
    %388 = vmatmul.bf16.gmra.mxu0 %v210
    %v389 = vpop.f32.mrf.mxu0
    %v390 = vadd.f32 %v341, %v389
    %v391 = vpop.f32.mrf.mxu0
    %v392 = vadd.f32 %v343, %v391
    %393 = vmatmul.bf16.gmra.mxu0 %v211
    %v394 = vpop.f32.mrf.mxu0
    %v395 = vadd.f32 %v346, %v394
    %v396 = vpop.f32.mrf.mxu0
    %v397 = vadd.f32 %v348, %v396
    %398 = vmatmul.bf16.gmra.mxu0 %v212
    %v399 = vpop.f32.mrf.mxu0
    %v400 = vadd.f32 %v351, %v399
    %v401 = vpop.f32.mrf.mxu0
    %v402 = vadd.f32 %v353, %v401
    %403 = vmatmul.bf16.gmra.mxu0 %v213
    %v404 = vpop.f32.mrf.mxu0
    %v405 = vadd.f32 %v356, %v404
    %v406 = vpop.f32.mrf.mxu0
    %v407 = vadd.f32 %v358, %v406
    %408 = vdwg.mxu0
    %v409 = vmax.f32 %v370, 0.0
    %v410 = vmax.f32 %v372, 0.0
    %v411 = vmax.f32 %v375, 0.0
    %v412 = vmax.f32 %v377, 0.0
    %v413 = vmax.f32 %v380, 0.0
    %v414 = vmax.f32 %v382, 0.0
    %v415 = vmax.f32 %v385, 0.0
    %v416 = vmax.f32 %v387, 0.0
    %v417 = vmax.f32 %v390, 0.0
    %v418 = vmax.f32 %v392, 0.0
    %v419 = vmax.f32 %v395, 0.0
    %v420 = vmax.f32 %v397, 0.0
    %v421 = vmax.f32 %v400, 0.0
    %v422 = vmax.f32 %v402, 0.0
    %v423 = vmax.f32 %v405, 0.0
    %v424 = vmax.f32 %v407, 0.0
    %s425 = scalar_lea.vmem %s0, 64
    %v426 = vld [vmem:[%s425] sm:$0xf]
    %v427 = vld [vmem:[%s425 + $0x4] sm:$0xf]
    %v428 = vld [vmem:[%s425 + $0x8] sm:$0xf]
    %v429 = vld [vmem:[%s425 + $0xc] sm:$0xf]
    %v430 = vld [vmem:[%s425 + $0x10] sm:$0xf]
    %v431 = vld [vmem:[%s425 + $0x14] sm:$0xf]
    %v432 = vld [vmem:[%s425 + $0x18] sm:$0xf]
    %v433 = vld [vmem:[%s425 + $0x1c] sm:$0xf]
    %v434 = vld [vmem:[%s425 + $0x20] sm:$0xf]
    %v435 = vld [vmem:[%s425 + $0x24] sm:$0xf]
    %v436 = vld [vmem:[%s425 + $0x28] sm:$0xf]
    %v437 = vld [vmem:[%s425 + $0x2c] sm:$0xf]
    %v438 = vld [vmem:[%s425 + $0x30] sm:$0xf]
    %v439 = vld [vmem:[%s425 + $0x34] sm:$0xf]
    %v440 = vld [vmem:[%s425 + $0x38] sm:$0xf]
    %v441 = vld [vmem:[%s425 + $0x3c] sm:$0xf]
    %v442 = vpack.c.bf16 %v410, %v409
    %v443 = vpack.c.bf16 %v412, %v411
    %v444 = vpack.c.bf16 %v414, %v413
    %v445 = vpack.c.bf16 %v416, %v415
    %v446 = vpack.c.bf16 %v418, %v417
    %v447 = vpack.c.bf16 %v420, %v419
    %v448 = vpack.c.bf16 %v422, %v421
    %v449 = vpack.c.bf16 %v424, %v423
    %v466 = vunpack.c.l.b16 %v426
    %v467 = vunpack.c.l.b16 %v427
    %v468 = vunpack.c.l.b16 %v428
    %v469 = vunpack.c.l.b16 %v429
    %v470 = vunpack.c.l.b16 %v430
    %v471 = vunpack.c.l.b16 %v431
    %v472 = vunpack.c.l.b16 %v432
    %v473 = vunpack.c.l.b16 %v433
    %v474 = vunpack.c.l.b16 %v434
    %v475 = vunpack.c.l.b16 %v435
    %v476 = vunpack.c.l.b16 %v436
    %v477 = vunpack.c.l.b16 %v437
    %v478 = vunpack.c.l.b16 %v438
    %v479 = vunpack.c.l.b16 %v439
    %v480 = vunpack.c.l.b16 %v440
    %v481 = vunpack.c.l.b16 %v441
    %v482 = vpack.c.b16 %v467, %v466
    %v483 = vpack.c.b16 %v469, %v468
    %v484 = vpack.c.b16 %v471, %v470
    %v485 = vpack.c.b16 %v473, %v472
    %v486 = vpack.c.b16 %v475, %v474
    %v487 = vpack.c.b16 %v477, %v476
    %v488 = vpack.c.b16 %v479, %v478
    %v489 = vpack.c.b16 %v481, %v480
    %498 = vmatpush.bf16.msra.mxu0 %v449
    %499 = vmatpush.bf16.msra.mxu0 %v448
    %500 = vmatpush.bf16.msra.mxu0 %v447
    %501 = vmatpush.bf16.msra.mxu0 %v446
    %502 = vmatpush.bf16.msra.mxu0 %v445
    %503 = vmatpush.bf16.msra.mxu0 %v444
    %504 = vmatpush.bf16.msra.mxu0 %v443
    %505 = vmatpush.bf16.msra.mxu0 %v442
    %506 = vmatmul.bf16.gmra.mxu0 %v482
    %v507 = vpop.f32.mrf.mxu0
    %v508 = vadd.f32 0.0, %v507
    %v509 = vpop.f32.mrf.mxu0
    %v510 = vadd.f32 0.0, %v509
    %511 = vmatmul.bf16.gmra.mxu0 %v483
    %v512 = vpop.f32.mrf.mxu0
    %v513 = vadd.f32 0.0, %v512
    %v514 = vpop.f32.mrf.mxu0
    %v515 = vadd.f32 0.0, %v514
    %516 = vmatmul.bf16.gmra.mxu0 %v484
    %v517 = vpop.f32.mrf.mxu0
    %v518 = vadd.f32 0.0, %v517
    %v519 = vpop.f32.mrf.mxu0
    %v520 = vadd.f32 0.0, %v519
    %521 = vmatmul.bf16.gmra.mxu0 %v485
    %v522 = vpop.f32.mrf.mxu0
    %v523 = vadd.f32 0.0, %v522
    %v524 = vpop.f32.mrf.mxu0
    %v525 = vadd.f32 0.0, %v524
    %526 = vmatmul.bf16.gmra.mxu0 %v486
    %v527 = vpop.f32.mrf.mxu0
    %v528 = vadd.f32 0.0, %v527
    %v529 = vpop.f32.mrf.mxu0
    %v530 = vadd.f32 0.0, %v529
    %531 = vmatmul.bf16.gmra.mxu0 %v487
    %v532 = vpop.f32.mrf.mxu0
    %v533 = vadd.f32 0.0, %v532
    %v534 = vpop.f32.mrf.mxu0
    %v535 = vadd.f32 0.0, %v534
    %536 = vmatmul.bf16.gmra.mxu0 %v488
    %v537 = vpop.f32.mrf.mxu0
    %v538 = vadd.f32 0.0, %v537
    %v539 = vpop.f32.mrf.mxu0
    %v540 = vadd.f32 0.0, %v539
    %541 = vmatmul.bf16.gmra.mxu0 %v489
    %v542 = vpop.f32.mrf.mxu0
    %v543 = vadd.f32 0.0, %v542
    %v544 = vpop.f32.mrf.mxu0
    %v545 = vadd.f32 0.0, %v544
    %546 = vdwg.mxu0
    %v547 = vld [vmem:[#allocation2 + $0x80] sm:$0xf]
    %v548 = vld [vmem:[#allocation2 + $0x84] sm:$0xf]
    %v549 = vld [vmem:[#allocation2 + $0x88] sm:$0xf]
    %v550 = vld [vmem:[#allocation2 + $0x8c] sm:$0xf]
    %v551 = vld [vmem:[#allocation2 + $0x90] sm:$0xf]
    %v552 = vld [vmem:[#allocation2 + $0x94] sm:$0xf]
    %v553 = vld [vmem:[#allocation2 + $0x98] sm:$0xf]
    %v554 = vld [vmem:[#allocation2 + $0x9c] sm:$0xf]
    %v555 = vld [vmem:[#allocation2 + $0xa0] sm:$0xf]
    %v556 = vld [vmem:[#allocation2 + $0xa4] sm:$0xf]
    %v557 = vld [vmem:[#allocation2 + $0xa8] sm:$0xf]
    %v558 = vld [vmem:[#allocation2 + $0xac] sm:$0xf]
    %v559 = vld [vmem:[#allocation2 + $0xb0] sm:$0xf]
    %v560 = vld [vmem:[#allocation2 + $0xb4] sm:$0xf]
    %v561 = vld [vmem:[#allocation2 + $0xb8] sm:$0xf]
    %v562 = vld [vmem:[#allocation2 + $0xbc] sm:$0xf]
    %v563 = vld [vmem:[#allocation2 + $0xc0] sm:$0xf]
    %v564 = vld [vmem:[#allocation2 + $0xc4] sm:$0xf]
    %v565 = vld [vmem:[#allocation2 + $0xc8] sm:$0xf]
    %v566 = vld [vmem:[#allocation2 + $0xcc] sm:$0xf]
    %v567 = vld [vmem:[#allocation2 + $0xd0] sm:$0xf]
    %v568 = vld [vmem:[#allocation2 + $0xd4] sm:$0xf]
    %v569 = vld [vmem:[#allocation2 + $0xd8] sm:$0xf]
    %v570 = vld [vmem:[#allocation2 + $0xdc] sm:$0xf]
    %v571 = vld [vmem:[#allocation2 + $0xe0] sm:$0xf]
    %v572 = vld [vmem:[#allocation2 + $0xe4] sm:$0xf]
    %v573 = vld [vmem:[#allocation2 + $0xe8] sm:$0xf]
    %v574 = vld [vmem:[#allocation2 + $0xec] sm:$0xf]
    %v575 = vld [vmem:[#allocation2 + $0xf0] sm:$0xf]
    %v576 = vld [vmem:[#allocation2 + $0xf4] sm:$0xf]
    %v577 = vld [vmem:[#allocation2 + $0xf8] sm:$0xf]
    %v578 = vld [vmem:[#allocation2 + $0xfc] sm:$0xf]
    %v579 = vpack.c.bf16 %v510, %v508
    %v580 = vpack.c.bf16 %v515, %v513
    %v581 = vpack.c.bf16 %v520, %v518
    %v582 = vpack.c.bf16 %v525, %v523
    %v583 = vpack.c.bf16 %v530, %v528
    %v584 = vpack.c.bf16 %v535, %v533
    %v585 = vpack.c.bf16 %v540, %v538
    %v586 = vpack.c.bf16 %v545, %v543
    %v587 = vperm.slane %v36, 1
    %v620 = vunpack.c.l.b16 %v547
    %v621 = vunpack.c.l.b16 %v548
    %v622 = vunpack.c.l.b16 %v549
    %v623 = vunpack.c.l.b16 %v550
    %v624 = vunpack.c.l.b16 %v551
    %v625 = vunpack.c.l.b16 %v552
    %v626 = vunpack.c.l.b16 %v553
    %v627 = vunpack.c.l.b16 %v554
    %v628 = vunpack.c.l.b16 %v555
    %v629 = vunpack.c.l.b16 %v556
    %v630 = vunpack.c.l.b16 %v557
    %v631 = vunpack.c.l.b16 %v558
    %v632 = vunpack.c.l.b16 %v559
    %v633 = vunpack.c.l.b16 %v560
    %v634 = vunpack.c.l.b16 %v561
    %v635 = vunpack.c.l.b16 %v562
    %v636 = vunpack.c.l.b16 %v563
    %v637 = vunpack.c.l.b16 %v564
    %v638 = vunpack.c.l.b16 %v565
    %v639 = vunpack.c.l.b16 %v566
    %v640 = vunpack.c.l.b16 %v567
    %v641 = vunpack.c.l.b16 %v568
    %v642 = vunpack.c.l.b16 %v569
    %v643 = vunpack.c.l.b16 %v570
    %v644 = vunpack.c.l.b16 %v571
    %v645 = vunpack.c.l.b16 %v572
    %v646 = vunpack.c.l.b16 %v573
    %v647 = vunpack.c.l.b16 %v574
    %v648 = vunpack.c.l.b16 %v575
    %v649 = vunpack.c.l.b16 %v576
    %v650 = vunpack.c.l.b16 %v577
    %v651 = vunpack.c.l.b16 %v578
    %v652 = vpack.c.b16 %v621, %v620
    %v653 = vpack.c.b16 %v623, %v622
    %v654 = vpack.c.b16 %v625, %v624
    %v655 = vpack.c.b16 %v627, %v626
    %v656 = vpack.c.b16 %v629, %v628
    %v657 = vpack.c.b16 %v631, %v630
    %v658 = vpack.c.b16 %v633, %v632
    %v659 = vpack.c.b16 %v635, %v634
    %v660 = vpack.c.b16 %v637, %v636
    %v661 = vpack.c.b16 %v639, %v638
    %v662 = vpack.c.b16 %v641, %v640
    %v663 = vpack.c.b16 %v643, %v642
    %v664 = vpack.c.b16 %v645, %v644
    %v665 = vpack.c.b16 %v647, %v646
    %v666 = vpack.c.b16 %v649, %v648
    %v667 = vpack.c.b16 %v651, %v650
    %684 = vmatpush.bf16.msra.mxu0 %v659
    %685 = vmatpush.bf16.msra.mxu0 %v658
    %686 = vmatpush.bf16.msra.mxu0 %v657
    %687 = vmatpush.bf16.msra.mxu0 %v656
    %688 = vmatpush.bf16.msra.mxu0 %v655
    %689 = vmatpush.bf16.msra.mxu0 %v654
    %690 = vmatpush.bf16.msra.mxu0 %v653
    %691 = vmatpush.bf16.msra.mxu0 %v652
    %692 = vmatmul.bf16.gmra.mxu0 %v442
    %v693 = vpop.f32.mrf.mxu0
    %v694 = vadd.f32 %v587, %v693
    %v695 = vpop.f32.mrf.mxu0
    %v696 = vadd.f32 %v587, %v695
    %697 = vmatmul.bf16.gmra.mxu0 %v443
    %v698 = vpop.f32.mrf.mxu0
    %v699 = vadd.f32 %v587, %v698
    %v700 = vpop.f32.mrf.mxu0
    %v701 = vadd.f32 %v587, %v700
    %702 = vmatmul.bf16.gmra.mxu0 %v444
    %v703 = vpop.f32.mrf.mxu0
    %v704 = vadd.f32 %v587, %v703
    %v705 = vpop.f32.mrf.mxu0
    %v706 = vadd.f32 %v587, %v705
    %707 = vmatmul.bf16.gmra.mxu0 %v445
    %v708 = vpop.f32.mrf.mxu0
    %v709 = vadd.f32 %v587, %v708
    %v710 = vpop.f32.mrf.mxu0
    %v711 = vadd.f32 %v587, %v710
    %712 = vmatmul.bf16.gmra.mxu0 %v446
    %v713 = vpop.f32.mrf.mxu0
    %v714 = vadd.f32 %v587, %v713
    %v715 = vpop.f32.mrf.mxu0
    %v716 = vadd.f32 %v587, %v715
    %717 = vmatmul.bf16.gmra.mxu0 %v447
    %v718 = vpop.f32.mrf.mxu0
    %v719 = vadd.f32 %v587, %v718
    %v720 = vpop.f32.mrf.mxu0
    %v721 = vadd.f32 %v587, %v720
    %722 = vmatmul.bf16.gmra.mxu0 %v448
    %v723 = vpop.f32.mrf.mxu0
    %v724 = vadd.f32 %v587, %v723
    %v725 = vpop.f32.mrf.mxu0
    %v726 = vadd.f32 %v587, %v725
    %727 = vmatmul.bf16.gmra.mxu0 %v449
    %v728 = vpop.f32.mrf.mxu0
    %v729 = vadd.f32 %v587, %v728
    %v730 = vpop.f32.mrf.mxu0
    %v731 = vadd.f32 %v587, %v730
    %732 = vdwg.mxu0
    %733 = vmatpush.bf16.msra.mxu0 %v667
    %734 = vmatpush.bf16.msra.mxu0 %v666
    %735 = vmatpush.bf16.msra.mxu0 %v665
    %736 = vmatpush.bf16.msra.mxu0 %v664
    %737 = vmatpush.bf16.msra.mxu0 %v663
    %738 = vmatpush.bf16.msra.mxu0 %v662
    %739 = vmatpush.bf16.msra.mxu0 %v661
    %740 = vmatpush.bf16.msra.mxu0 %v660
    %741 = vmatmul.bf16.gmra.mxu0 %v579
    %v742 = vpop.f32.mrf.mxu0
    %v743 = vadd.f32 %v694, %v742
    %v744 = vpop.f32.mrf.mxu0
    %v745 = vadd.f32 %v696, %v744
    %746 = vmatmul.bf16.gmra.mxu0 %v580
    %v747 = vpop.f32.mrf.mxu0
    %v748 = vadd.f32 %v699, %v747
    %v749 = vpop.f32.mrf.mxu0
    %v750 = vadd.f32 %v701, %v749
    %751 = vmatmul.bf16.gmra.mxu0 %v581
    %v752 = vpop.f32.mrf.mxu0
    %v753 = vadd.f32 %v704, %v752
    %v754 = vpop.f32.mrf.mxu0
    %v755 = vadd.f32 %v706, %v754
    %756 = vmatmul.bf16.gmra.mxu0 %v582
    %v757 = vpop.f32.mrf.mxu0
    %v758 = vadd.f32 %v709, %v757
    %v759 = vpop.f32.mrf.mxu0
    %v760 = vadd.f32 %v711, %v759
    %761 = vmatmul.bf16.gmra.mxu0 %v583
    %v762 = vpop.f32.mrf.mxu0
    %v763 = vadd.f32 %v714, %v762
    %v764 = vpop.f32.mrf.mxu0
    %v765 = vadd.f32 %v716, %v764
    %766 = vmatmul.bf16.gmra.mxu0 %v584
    %v767 = vpop.f32.mrf.mxu0
    %v768 = vadd.f32 %v719, %v767
    %v769 = vpop.f32.mrf.mxu0
    %v770 = vadd.f32 %v721, %v769
    %771 = vmatmul.bf16.gmra.mxu0 %v585
    %v772 = vpop.f32.mrf.mxu0
    %v773 = vadd.f32 %v724, %v772
    %v774 = vpop.f32.mrf.mxu0
    %v775 = vadd.f32 %v726, %v774
    %776 = vmatmul.bf16.gmra.mxu0 %v586
    %v777 = vpop.f32.mrf.mxu0
    %v778 = vadd.f32 %v729, %v777
    %v779 = vpop.f32.mrf.mxu0
    %v780 = vadd.f32 %v731, %v779
    %781 = vdwg.mxu0
    %v782 = vmax.f32 %v743, 0.0
    %v783 = vmax.f32 %v745, 0.0
    %v784 = vmax.f32 %v748, 0.0
    %v785 = vmax.f32 %v750, 0.0
    %v786 = vmax.f32 %v753, 0.0
    %v787 = vmax.f32 %v755, 0.0
    %v788 = vmax.f32 %v758, 0.0
    %v789 = vmax.f32 %v760, 0.0
    %v790 = vmax.f32 %v763, 0.0
    %v791 = vmax.f32 %v765, 0.0
    %v792 = vmax.f32 %v768, 0.0
    %v793 = vmax.f32 %v770, 0.0
    %v794 = vmax.f32 %v773, 0.0
    %v795 = vmax.f32 %v775, 0.0
    %v796 = vmax.f32 %v778, 0.0
    %v797 = vmax.f32 %v780, 0.0
    %s798 = scalar_lea.vmem %s0, 128
    %v799 = vld [vmem:[%s798] sm:$0xf]
    %v800 = vld [vmem:[%s798 + $0x4] sm:$0xf]
    %v801 = vld [vmem:[%s798 + $0x8] sm:$0xf]
    %v802 = vld [vmem:[%s798 + $0xc] sm:$0xf]
    %v803 = vld [vmem:[%s798 + $0x10] sm:$0xf]
    %v804 = vld [vmem:[%s798 + $0x14] sm:$0xf]
    %v805 = vld [vmem:[%s798 + $0x18] sm:$0xf]
    %v806 = vld [vmem:[%s798 + $0x1c] sm:$0xf]
    %v807 = vld [vmem:[%s798 + $0x20] sm:$0xf]
    %v808 = vld [vmem:[%s798 + $0x24] sm:$0xf]
    %v809 = vld [vmem:[%s798 + $0x28] sm:$0xf]
    %v810 = vld [vmem:[%s798 + $0x2c] sm:$0xf]
    %v811 = vld [vmem:[%s798 + $0x30] sm:$0xf]
    %v812 = vld [vmem:[%s798 + $0x34] sm:$0xf]
    %v813 = vld [vmem:[%s798 + $0x38] sm:$0xf]
    %v814 = vld [vmem:[%s798 + $0x3c] sm:$0xf]
    %v815 = vpack.c.bf16 %v783, %v782
    %v816 = vpack.c.bf16 %v785, %v784
    %v817 = vpack.c.bf16 %v787, %v786
    %v818 = vpack.c.bf16 %v789, %v788
    %v819 = vpack.c.bf16 %v791, %v790
    %v820 = vpack.c.bf16 %v793, %v792
    %v821 = vpack.c.bf16 %v795, %v794
    %v822 = vpack.c.bf16 %v797, %v796
    %v839 = vunpack.c.l.b16 %v799
    %v840 = vunpack.c.l.b16 %v800
    %v841 = vunpack.c.l.b16 %v801
    %v842 = vunpack.c.l.b16 %v802
    %v843 = vunpack.c.l.b16 %v803
    %v844 = vunpack.c.l.b16 %v804
    %v845 = vunpack.c.l.b16 %v805
    %v846 = vunpack.c.l.b16 %v806
    %v847 = vunpack.c.l.b16 %v807
    %v848 = vunpack.c.l.b16 %v808
    %v849 = vunpack.c.l.b16 %v809
    %v850 = vunpack.c.l.b16 %v810
    %v851 = vunpack.c.l.b16 %v811
    %v852 = vunpack.c.l.b16 %v812
    %v853 = vunpack.c.l.b16 %v813
    %v854 = vunpack.c.l.b16 %v814
    %v855 = vpack.c.b16 %v840, %v839
    %v856 = vpack.c.b16 %v842, %v841
    %v857 = vpack.c.b16 %v844, %v843
    %v858 = vpack.c.b16 %v846, %v845
    %v859 = vpack.c.b16 %v848, %v847
    %v860 = vpack.c.b16 %v850, %v849
    %v861 = vpack.c.b16 %v852, %v851
    %v862 = vpack.c.b16 %v854, %v853
    %871 = vmatpush.bf16.msra.mxu0 %v822
    %872 = vmatpush.bf16.msra.mxu0 %v821
    %873 = vmatpush.bf16.msra.mxu0 %v820
    %874 = vmatpush.bf16.msra.mxu0 %v819
    %875 = vmatpush.bf16.msra.mxu0 %v818
    %876 = vmatpush.bf16.msra.mxu0 %v817
    %877 = vmatpush.bf16.msra.mxu0 %v816
    %878 = vmatpush.bf16.msra.mxu0 %v815
    %879 = vmatmul.bf16.gmra.mxu0 %v855
    %v880 = vpop.f32.mrf.mxu0
    %v881 = vadd.f32 0.0, %v880
    %v882 = vpop.f32.mrf.mxu0
    %v883 = vadd.f32 0.0, %v882
    %884 = vmatmul.bf16.gmra.mxu0 %v856
    %v885 = vpop.f32.mrf.mxu0
    %v886 = vadd.f32 0.0, %v885
    %v887 = vpop.f32.mrf.mxu0
    %v888 = vadd.f32 0.0, %v887
    %889 = vmatmul.bf16.gmra.mxu0 %v857
    %v890 = vpop.f32.mrf.mxu0
    %v891 = vadd.f32 0.0, %v890
    %v892 = vpop.f32.mrf.mxu0
    %v893 = vadd.f32 0.0, %v892
    %894 = vmatmul.bf16.gmra.mxu0 %v858
    %v895 = vpop.f32.mrf.mxu0
    %v896 = vadd.f32 0.0, %v895
    %v897 = vpop.f32.mrf.mxu0
    %v898 = vadd.f32 0.0, %v897
    %899 = vmatmul.bf16.gmra.mxu0 %v859
    %v900 = vpop.f32.mrf.mxu0
    %v901 = vadd.f32 0.0, %v900
    %v902 = vpop.f32.mrf.mxu0
    %v903 = vadd.f32 0.0, %v902
    %904 = vmatmul.bf16.gmra.mxu0 %v860
    %v905 = vpop.f32.mrf.mxu0
    %v906 = vadd.f32 0.0, %v905
    %v907 = vpop.f32.mrf.mxu0
    %v908 = vadd.f32 0.0, %v907
    %909 = vmatmul.bf16.gmra.mxu0 %v861
    %v910 = vpop.f32.mrf.mxu0
    %v911 = vadd.f32 0.0, %v910
    %v912 = vpop.f32.mrf.mxu0
    %v913 = vadd.f32 0.0, %v912
    %914 = vmatmul.bf16.gmra.mxu0 %v862
    %v915 = vpop.f32.mrf.mxu0
    %v916 = vadd.f32 0.0, %v915
    %v917 = vpop.f32.mrf.mxu0
    %v918 = vadd.f32 0.0, %v917
    %919 = vdwg.mxu0
    %v920 = vld [vmem:[#allocation2 + $0x100] sm:$0xf]
    %v921 = vld [vmem:[#allocation2 + $0x104] sm:$0xf]
    %v922 = vld [vmem:[#allocation2 + $0x108] sm:$0xf]
    %v923 = vld [vmem:[#allocation2 + $0x10c] sm:$0xf]
    %v924 = vld [vmem:[#allocation2 + $0x110] sm:$0xf]
    %v925 = vld [vmem:[#allocation2 + $0x114] sm:$0xf]
    %v926 = vld [vmem:[#allocation2 + $0x118] sm:$0xf]
    %v927 = vld [vmem:[#allocation2 + $0x11c] sm:$0xf]
    %v928 = vld [vmem:[#allocation2 + $0x120] sm:$0xf]
    %v929 = vld [vmem:[#allocation2 + $0x124] sm:$0xf]
    %v930 = vld [vmem:[#allocation2 + $0x128] sm:$0xf]
    %v931 = vld [vmem:[#allocation2 + $0x12c] sm:$0xf]
    %v932 = vld [vmem:[#allocation2 + $0x130] sm:$0xf]
    %v933 = vld [vmem:[#allocation2 + $0x134] sm:$0xf]
    %v934 = vld [vmem:[#allocation2 + $0x138] sm:$0xf]
    %v935 = vld [vmem:[#allocation2 + $0x13c] sm:$0xf]
    %v936 = vld [vmem:[#allocation2 + $0x140] sm:$0xf]
    %v937 = vld [vmem:[#allocation2 + $0x144] sm:$0xf]
    %v938 = vld [vmem:[#allocation2 + $0x148] sm:$0xf]
    %v939 = vld [vmem:[#allocation2 + $0x14c] sm:$0xf]
    %v940 = vld [vmem:[#allocation2 + $0x150] sm:$0xf]
    %v941 = vld [vmem:[#allocation2 + $0x154] sm:$0xf]
    %v942 = vld [vmem:[#allocation2 + $0x158] sm:$0xf]
    %v943 = vld [vmem:[#allocation2 + $0x15c] sm:$0xf]
    %v944 = vld [vmem:[#allocation2 + $0x160] sm:$0xf]
    %v945 = vld [vmem:[#allocation2 + $0x164] sm:$0xf]
    %v946 = vld [vmem:[#allocation2 + $0x168] sm:$0xf]
    %v947 = vld [vmem:[#allocation2 + $0x16c] sm:$0xf]
    %v948 = vld [vmem:[#allocation2 + $0x170] sm:$0xf]
    %v949 = vld [vmem:[#allocation2 + $0x174] sm:$0xf]
    %v950 = vld [vmem:[#allocation2 + $0x178] sm:$0xf]
    %v951 = vld [vmem:[#allocation2 + $0x17c] sm:$0xf]
    %v952 = vpack.c.bf16 %v883, %v881
    %v953 = vpack.c.bf16 %v888, %v886
    %v954 = vpack.c.bf16 %v893, %v891
    %v955 = vpack.c.bf16 %v898, %v896
    %v956 = vpack.c.bf16 %v903, %v901
    %v957 = vpack.c.bf16 %v908, %v906
    %v958 = vpack.c.bf16 %v913, %v911
    %v959 = vpack.c.bf16 %v918, %v916
    %v960 = vperm.slane %v36, 2
    %v993 = vunpack.c.l.b16 %v920
    %v994 = vunpack.c.l.b16 %v921
    %v995 = vunpack.c.l.b16 %v922
    %v996 = vunpack.c.l.b16 %v923
    %v997 = vunpack.c.l.b16 %v924
    %v998 = vunpack.c.l.b16 %v925
    %v999 = vunpack.c.l.b16 %v926
    %v1000 = vunpack.c.l.b16 %v927
    %v1001 = vunpack.c.l.b16 %v928
    %v1002 = vunpack.c.l.b16 %v929
    %v1003 = vunpack.c.l.b16 %v930
    %v1004 = vunpack.c.l.b16 %v931
    %v1005 = vunpack.c.l.b16 %v932
    %v1006 = vunpack.c.l.b16 %v933
    %v1007 = vunpack.c.l.b16 %v934
    %v1008 = vunpack.c.l.b16 %v935
    %v1009 = vunpack.c.l.b16 %v936
    %v1010 = vunpack.c.l.b16 %v937
    %v1011 = vunpack.c.l.b16 %v938
    %v1012 = vunpack.c.l.b16 %v939
    %v1013 = vunpack.c.l.b16 %v940
    %v1014 = vunpack.c.l.b16 %v941
    %v1015 = vunpack.c.l.b16 %v942
    %v1016 = vunpack.c.l.b16 %v943
    %v1017 = vunpack.c.l.b16 %v944
    %v1018 = vunpack.c.l.b16 %v945
    %v1019 = vunpack.c.l.b16 %v946
    %v1020 = vunpack.c.l.b16 %v947
    %v1021 = vunpack.c.l.b16 %v948
    %v1022 = vunpack.c.l.b16 %v949
    %v1023 = vunpack.c.l.b16 %v950
    %v1024 = vunpack.c.l.b16 %v951
    %v1025 = vpack.c.b16 %v994, %v993
    %v1026 = vpack.c.b16 %v996, %v995
    %v1027 = vpack.c.b16 %v998, %v997
    %v1028 = vpack.c.b16 %v1000, %v999
    %v1029 = vpack.c.b16 %v1002, %v1001
    %v1030 = vpack.c.b16 %v1004, %v1003
    %v1031 = vpack.c.b16 %v1006, %v1005
    %v1032 = vpack.c.b16 %v1008, %v1007
    %v1033 = vpack.c.b16 %v1010, %v1009
    %v1034 = vpack.c.b16 %v1012, %v1011
    %v1035 = vpack.c.b16 %v1014, %v1013
    %v1036 = vpack.c.b16 %v1016, %v1015
    %v1037 = vpack.c.b16 %v1018, %v1017
    %v1038 = vpack.c.b16 %v1020, %v1019
    %v1039 = vpack.c.b16 %v1022, %v1021
    %v1040 = vpack.c.b16 %v1024, %v1023
    %1057 = vmatpush.bf16.msra.mxu0 %v1032
    %1058 = vmatpush.bf16.msra.mxu0 %v1031
    %1059 = vmatpush.bf16.msra.mxu0 %v1030
    %1060 = vmatpush.bf16.msra.mxu0 %v1029
    %1061 = vmatpush.bf16.msra.mxu0 %v1028
    %1062 = vmatpush.bf16.msra.mxu0 %v1027
    %1063 = vmatpush.bf16.msra.mxu0 %v1026
    %1064 = vmatpush.bf16.msra.mxu0 %v1025
    %1065 = vmatmul.bf16.gmra.mxu0 %v815
    %v1066 = vpop.f32.mrf.mxu0
    %v1067 = vadd.f32 %v960, %v1066
    %v1068 = vpop.f32.mrf.mxu0
    %v1069 = vadd.f32 %v960, %v1068
    %1070 = vmatmul.bf16.gmra.mxu0 %v816
    %v1071 = vpop.f32.mrf.mxu0
    %v1072 = vadd.f32 %v960, %v1071
    %v1073 = vpop.f32.mrf.mxu0
    %v1074 = vadd.f32 %v960, %v1073
    %1075 = vmatmul.bf16.gmra.mxu0 %v817
    %v1076 = vpop.f32.mrf.mxu0
    %v1077 = vadd.f32 %v960, %v1076
    %v1078 = vpop.f32.mrf.mxu0
    %v1079 = vadd.f32 %v960, %v1078
    %1080 = vmatmul.bf16.gmra.mxu0 %v818
    %v1081 = vpop.f32.mrf.mxu0
    %v1082 = vadd.f32 %v960, %v1081
    %v1083 = vpop.f32.mrf.mxu0
    %v1084 = vadd.f32 %v960, %v1083
    %1085 = vmatmul.bf16.gmra.mxu0 %v819
    %v1086 = vpop.f32.mrf.mxu0
    %v1087 = vadd.f32 %v960, %v1086
    %v1088 = vpop.f32.mrf.mxu0
    %v1089 = vadd.f32 %v960, %v1088
    %1090 = vmatmul.bf16.gmra.mxu0 %v820
    %v1091 = vpop.f32.mrf.mxu0
    %v1092 = vadd.f32 %v960, %v1091
    %v1093 = vpop.f32.mrf.mxu0
    %v1094 = vadd.f32 %v960, %v1093
    %1095 = vmatmul.bf16.gmra.mxu0 %v821
    %v1096 = vpop.f32.mrf.mxu0
    %v1097 = vadd.f32 %v960, %v1096
    %v1098 = vpop.f32.mrf.mxu0
    %v1099 = vadd.f32 %v960, %v1098
    %1100 = vmatmul.bf16.gmra.mxu0 %v822
    %v1101 = vpop.f32.mrf.mxu0
    %v1102 = vadd.f32 %v960, %v1101
    %v1103 = vpop.f32.mrf.mxu0
    %v1104 = vadd.f32 %v960, %v1103
    %1105 = vdwg.mxu0
    %1106 = vmatpush.bf16.msra.mxu0 %v1040
    %1107 = vmatpush.bf16.msra.mxu0 %v1039
    %1108 = vmatpush.bf16.msra.mxu0 %v1038
    %1109 = vmatpush.bf16.msra.mxu0 %v1037
    %1110 = vmatpush.bf16.msra.mxu0 %v1036
    %1111 = vmatpush.bf16.msra.mxu0 %v1035
    %1112 = vmatpush.bf16.msra.mxu0 %v1034
    %1113 = vmatpush.bf16.msra.mxu0 %v1033
    %1114 = vmatmul.bf16.gmra.mxu0 %v952
    %v1115 = vpop.f32.mrf.mxu0
    %v1116 = vadd.f32 %v1067, %v1115
    %v1117 = vpop.f32.mrf.mxu0
    %v1118 = vadd.f32 %v1069, %v1117
    %1119 = vmatmul.bf16.gmra.mxu0 %v953
    %v1120 = vpop.f32.mrf.mxu0
    %v1121 = vadd.f32 %v1072, %v1120
    %v1122 = vpop.f32.mrf.mxu0
    %v1123 = vadd.f32 %v1074, %v1122
    %1124 = vmatmul.bf16.gmra.mxu0 %v954
    %v1125 = vpop.f32.mrf.mxu0
    %v1126 = vadd.f32 %v1077, %v1125
    %v1127 = vpop.f32.mrf.mxu0
    %v1128 = vadd.f32 %v1079, %v1127
    %1129 = vmatmul.bf16.gmra.mxu0 %v955
    %v1130 = vpop.f32.mrf.mxu0
    %v1131 = vadd.f32 %v1082, %v1130
    %v1132 = vpop.f32.mrf.mxu0
    %v1133 = vadd.f32 %v1084, %v1132
    %1134 = vmatmul.bf16.gmra.mxu0 %v956
    %v1135 = vpop.f32.mrf.mxu0
    %v1136 = vadd.f32 %v1087, %v1135
    %v1137 = vpop.f32.mrf.mxu0
    %v1138 = vadd.f32 %v1089, %v1137
    %1139 = vmatmul.bf16.gmra.mxu0 %v957
    %v1140 = vpop.f32.mrf.mxu0
    %v1141 = vadd.f32 %v1092, %v1140
    %v1142 = vpop.f32.mrf.mxu0
    %v1143 = vadd.f32 %v1094, %v1142
    %1144 = vmatmul.bf16.gmra.mxu0 %v958
    %v1145 = vpop.f32.mrf.mxu0
    %v1146 = vadd.f32 %v1097, %v1145
    %v1147 = vpop.f32.mrf.mxu0
    %v1148 = vadd.f32 %v1099, %v1147
    %1149 = vmatmul.bf16.gmra.mxu0 %v959
    %v1150 = vpop.f32.mrf.mxu0
    %v1151 = vadd.f32 %v1102, %v1150
    %v1152 = vpop.f32.mrf.mxu0
    %v1153 = vadd.f32 %v1104, %v1152
    %1154 = vdwg.mxu0
    %v1155 = vld [vmem:[%s4] sm:$0xff]
    %v1156 = vld [vmem:[%s4 + $0x8] sm:$0xff]
    %v1157 = vld [vmem:[%s4 + $0x10] sm:$0xff]
    %v1158 = vld [vmem:[%s4 + $0x18] sm:$0xff]
    %v1159 = vld [vmem:[%s4 + $0x20] sm:$0xff]
    %v1160 = vld [vmem:[%s4 + $0x28] sm:$0xff]
    %v1161 = vld [vmem:[%s4 + $0x30] sm:$0xff]
    %v1162 = vld [vmem:[%s4 + $0x38] sm:$0xff]
    %v1163 = vld [vmem:[%s4 + $0x40] sm:$0xff]
    %v1164 = vld [vmem:[%s4 + $0x48] sm:$0xff]
    %v1165 = vld [vmem:[%s4 + $0x50] sm:$0xff]
    %v1166 = vld [vmem:[%s4 + $0x58] sm:$0xff]
    %v1167 = vld [vmem:[%s4 + $0x60] sm:$0xff]
    %v1168 = vld [vmem:[%s4 + $0x68] sm:$0xff]
    %v1169 = vld [vmem:[%s4 + $0x70] sm:$0xff]
    %v1170 = vld [vmem:[%s4 + $0x78] sm:$0xff]
    %v1171 = vld [vmem:[%s4 + $0x80] sm:$0xff]
    %v1172 = vld [vmem:[%s4 + $0x88] sm:$0xff]
    %v1173 = vld [vmem:[%s4 + $0x90] sm:$0xff]
    %v1174 = vld [vmem:[%s4 + $0x98] sm:$0xff]
    %v1175 = vld [vmem:[%s4 + $0xa0] sm:$0xff]
    %v1176 = vld [vmem:[%s4 + $0xa8] sm:$0xff]
    %v1177 = vld [vmem:[%s4 + $0xb0] sm:$0xff]
    %v1178 = vld [vmem:[%s4 + $0xb8] sm:$0xff]
    %v1179 = vld [vmem:[%s4 + $0xc0] sm:$0xff]
    %v1180 = vld [vmem:[%s4 + $0xc8] sm:$0xff]
    %v1181 = vld [vmem:[%s4 + $0xd0] sm:$0xff]
    %v1182 = vld [vmem:[%s4 + $0xd8] sm:$0xff]
    %v1183 = vld [vmem:[%s4 + $0xe0] sm:$0xff]
    %v1184 = vld [vmem:[%s4 + $0xe8] sm:$0xff]
    %v1185 = vld [vmem:[%s4 + $0xf0] sm:$0xff]
    %v1186 = vld [vmem:[%s4 + $0xf8] sm:$0xff]
    %v1187 = vlaneseq
    %v1188 = vand.u32 %v1187, 127
    %1189 = vset.pattern.permute.xlu0 0
    %1190 = vperm.xlu0 %1189, %v1155
    %v1191 = vpop.permute.xlu0 %1190
    %1192 = vset.pattern.permute.xlu0 0
    %1193 = vperm.xlu0 %1192, %v1156
    %v1194 = vpop.permute.xlu0 %1193
    %1195 = vset.pattern.permute.xlu0 0
    %1196 = vperm.xlu0 %1195, %v1157
    %v1197 = vpop.permute.xlu0 %1196
    %1198 = vset.pattern.permute.xlu0 0
    %1199 = vperm.xlu0 %1198, %v1158
    %v1200 = vpop.permute.xlu0 %1199
    %1201 = vset.pattern.permute.xlu0 0
    %1202 = vperm.xlu0 %1201, %v1159
    %v1203 = vpop.permute.xlu0 %1202
    %1204 = vset.pattern.permute.xlu0 0
    %1205 = vperm.xlu0 %1204, %v1160
    %v1206 = vpop.permute.xlu0 %1205
    %1207 = vset.pattern.permute.xlu0 0
    %1208 = vperm.xlu0 %1207, %v1161
    %v1209 = vpop.permute.xlu0 %1208
    %1210 = vset.pattern.permute.xlu0 0
    %1211 = vperm.xlu0 %1210, %v1162
    %v1212 = vpop.permute.xlu0 %1211
    %1213 = vset.pattern.permute.xlu0 0
    %1214 = vperm.xlu0 %1213, %v1163
    %v1215 = vpop.permute.xlu0 %1214
    %1216 = vset.pattern.permute.xlu0 0
    %1217 = vperm.xlu0 %1216, %v1164
    %v1218 = vpop.permute.xlu0 %1217
    %1219 = vset.pattern.permute.xlu0 0
    %1220 = vperm.xlu0 %1219, %v1165
    %v1221 = vpop.permute.xlu0 %1220
    %1222 = vset.pattern.permute.xlu0 0
    %1223 = vperm.xlu0 %1222, %v1166
    %v1224 = vpop.permute.xlu0 %1223
    %1225 = vset.pattern.permute.xlu0 0
    %1226 = vperm.xlu0 %1225, %v1167
    %v1227 = vpop.permute.xlu0 %1226
    %1228 = vset.pattern.permute.xlu0 0
    %1229 = vperm.xlu0 %1228, %v1168
    %v1230 = vpop.permute.xlu0 %1229
    %1231 = vset.pattern.permute.xlu0 0
    %1232 = vperm.xlu0 %1231, %v1169
    %v1233 = vpop.permute.xlu0 %1232
    %1234 = vset.pattern.permute.xlu0 0
    %1235 = vperm.xlu0 %1234, %v1170
    %v1236 = vpop.permute.xlu0 %1235
    %1237 = vset.pattern.permute.xlu0 0
    %1238 = vperm.xlu0 %1237, %v1171
    %v1239 = vpop.permute.xlu0 %1238
    %1240 = vset.pattern.permute.xlu0 0
    %1241 = vperm.xlu0 %1240, %v1172
    %v1242 = vpop.permute.xlu0 %1241
    %1243 = vset.pattern.permute.xlu0 0
    %1244 = vperm.xlu0 %1243, %v1173
    %v1245 = vpop.permute.xlu0 %1244
    %1246 = vset.pattern.permute.xlu0 0
    %1247 = vperm.xlu0 %1246, %v1174
    %v1248 = vpop.permute.xlu0 %1247
    %1249 = vset.pattern.permute.xlu0 0
    %1250 = vperm.xlu0 %1249, %v1175
    %v1251 = vpop.permute.xlu0 %1250
    %1252 = vset.pattern.permute.xlu0 0
    %1253 = vperm.xlu0 %1252, %v1176
    %v1254 = vpop.permute.xlu0 %1253
    %1255 = vset.pattern.permute.xlu0 0
    %1256 = vperm.xlu0 %1255, %v1177
    %v1257 = vpop.permute.xlu0 %1256
    %1258 = vset.pattern.permute.xlu0 0
    %1259 = vperm.xlu0 %1258, %v1178
    %v1260 = vpop.permute.xlu0 %1259
    %1261 = vset.pattern.permute.xlu0 0
    %1262 = vperm.xlu0 %1261, %v1179
    %v1263 = vpop.permute.xlu0 %1262
    %1264 = vset.pattern.permute.xlu0 0
    %1265 = vperm.xlu0 %1264, %v1180
    %v1266 = vpop.permute.xlu0 %1265
    %1267 = vset.pattern.permute.xlu0 0
    %1268 = vperm.xlu0 %1267, %v1181
    %v1269 = vpop.permute.xlu0 %1268
    %1270 = vset.pattern.permute.xlu0 0
    %1271 = vperm.xlu0 %1270, %v1182
    %v1272 = vpop.permute.xlu0 %1271
    %1273 = vset.pattern.permute.xlu0 0
    %1274 = vperm.xlu0 %1273, %v1183
    %v1275 = vpop.permute.xlu0 %1274
    %1276 = vset.pattern.permute.xlu0 0
    %1277 = vperm.xlu0 %1276, %v1184
    %v1278 = vpop.permute.xlu0 %1277
    %1279 = vset.pattern.permute.xlu0 0
    %1280 = vperm.xlu0 %1279, %v1185
    %v1281 = vpop.permute.xlu0 %1280
    %1282 = vset.pattern.permute.xlu0 0
    %1283 = vperm.xlu0 %1282, %v1186
    %v1284 = vpop.permute.xlu0 %1283
    %vm1285 = vcmp.eq.s32.totalorder %v1191, %v1188
    %vm1286 = vcmp.eq.s32.totalorder %v1194, %v1188
    %vm1287 = vcmp.eq.s32.totalorder %v1197, %v1188
    %vm1288 = vcmp.eq.s32.totalorder %v1200, %v1188
    %vm1289 = vcmp.eq.s32.totalorder %v1203, %v1188
    %vm1290 = vcmp.eq.s32.totalorder %v1206, %v1188
    %vm1291 = vcmp.eq.s32.totalorder %v1209, %v1188
    %vm1292 = vcmp.eq.s32.totalorder %v1212, %v1188
    %vm1293 = vcmp.eq.s32.totalorder %v1215, %v1188
    %vm1294 = vcmp.eq.s32.totalorder %v1218, %v1188
    %vm1295 = vcmp.eq.s32.totalorder %v1221, %v1188
    %vm1296 = vcmp.eq.s32.totalorder %v1224, %v1188
    %vm1297 = vcmp.eq.s32.totalorder %v1227, %v1188
    %vm1298 = vcmp.eq.s32.totalorder %v1230, %v1188
    %vm1299 = vcmp.eq.s32.totalorder %v1233, %v1188
    %vm1300 = vcmp.eq.s32.totalorder %v1236, %v1188
    %vm1301 = vcmp.eq.s32.totalorder %v1239, %v1188
    %vm1302 = vcmp.eq.s32.totalorder %v1242, %v1188
    %vm1303 = vcmp.eq.s32.totalorder %v1245, %v1188
    %vm1304 = vcmp.eq.s32.totalorder %v1248, %v1188
    %vm1305 = vcmp.eq.s32.totalorder %v1251, %v1188
    %vm1306 = vcmp.eq.s32.totalorder %v1254, %v1188
    %vm1307 = vcmp.eq.s32.totalorder %v1257, %v1188
    %vm1308 = vcmp.eq.s32.totalorder %v1260, %v1188
    %vm1309 = vcmp.eq.s32.totalorder %v1263, %v1188
    %vm1310 = vcmp.eq.s32.totalorder %v1266, %v1188
    %vm1311 = vcmp.eq.s32.totalorder %v1269, %v1188
    %vm1312 = vcmp.eq.s32.totalorder %v1272, %v1188
    %vm1313 = vcmp.eq.s32.totalorder %v1275, %v1188
    %vm1314 = vcmp.eq.s32.totalorder %v1278, %v1188
    %vm1315 = vcmp.eq.s32.totalorder %v1281, %v1188
    %vm1316 = vcmp.eq.s32.totalorder %v1284, %v1188
    %v1317 = vsel %vm1285, 1, 0
    %v1318 = vsel %vm1286, 1, 0
    %v1319 = vsel %vm1287, 1, 0
    %v1320 = vsel %vm1288, 1, 0
    %v1321 = vsel %vm1289, 1, 0
    %v1322 = vsel %vm1290, 1, 0
    %v1323 = vsel %vm1291, 1, 0
    %v1324 = vsel %vm1292, 1, 0
    %v1325 = vsel %vm1293, 1, 0
    %v1326 = vsel %vm1294, 1, 0
    %v1327 = vsel %vm1295, 1, 0
    %v1328 = vsel %vm1296, 1, 0
    %v1329 = vsel %vm1297, 1, 0
    %v1330 = vsel %vm1298, 1, 0
    %v1331 = vsel %vm1299, 1, 0
    %v1332 = vsel %vm1300, 1, 0
    %v1333 = vsel %vm1301, 1, 0
    %v1334 = vsel %vm1302, 1, 0
    %v1335 = vsel %vm1303, 1, 0
    %v1336 = vsel %vm1304, 1, 0
    %v1337 = vsel %vm1305, 1, 0
    %v1338 = vsel %vm1306, 1, 0
    %v1339 = vsel %vm1307, 1, 0
    %v1340 = vsel %vm1308, 1, 0
    %v1341 = vsel %vm1309, 1, 0
    %v1342 = vsel %vm1310, 1, 0
    %v1343 = vsel %vm1311, 1, 0
    %v1344 = vsel %vm1312, 1, 0
    %v1345 = vsel %vm1313, 1, 0
    %v1346 = vsel %vm1314, 1, 0
    %v1347 = vsel %vm1315, 1, 0
    %v1348 = vsel %vm1316, 1, 0
    %v1349 = vcvt.s32.f32 %v1317
    %v1350 = vcvt.s32.f32 %v1318
    %v1351 = vcvt.s32.f32 %v1319
    %v1352 = vcvt.s32.f32 %v1320
    %v1353 = vcvt.s32.f32 %v1321
    %v1354 = vcvt.s32.f32 %v1322
    %v1355 = vcvt.s32.f32 %v1323
    %v1356 = vcvt.s32.f32 %v1324
    %v1357 = vcvt.s32.f32 %v1325
    %v1358 = vcvt.s32.f32 %v1326
    %v1359 = vcvt.s32.f32 %v1327
    %v1360 = vcvt.s32.f32 %v1328
    %v1361 = vcvt.s32.f32 %v1329
    %v1362 = vcvt.s32.f32 %v1330
    %v1363 = vcvt.s32.f32 %v1331
    %v1364 = vcvt.s32.f32 %v1332
    %v1365 = vcvt.s32.f32 %v1333
    %v1366 = vcvt.s32.f32 %v1334
    %v1367 = vcvt.s32.f32 %v1335
    %v1368 = vcvt.s32.f32 %v1336
    %v1369 = vcvt.s32.f32 %v1337
    %v1370 = vcvt.s32.f32 %v1338
    %v1371 = vcvt.s32.f32 %v1339
    %v1372 = vcvt.s32.f32 %v1340
    %v1373 = vcvt.s32.f32 %v1341
    %v1374 = vcvt.s32.f32 %v1342
    %v1375 = vcvt.s32.f32 %v1343
    %v1376 = vcvt.s32.f32 %v1344
    %v1377 = vcvt.s32.f32 %v1345
    %v1378 = vcvt.s32.f32 %v1346
    %v1379 = vcvt.s32.f32 %v1347
    %v1380 = vcvt.s32.f32 %v1348
    %v1381 = vpack.c.bf16 %v1350, %v1349
    %v1382 = vpack.c.bf16 %v1352, %v1351
    %v1383 = vpack.c.bf16 %v1354, %v1353
    %v1384 = vpack.c.bf16 %v1356, %v1355
    %v1385 = vpack.c.bf16 %v1358, %v1357
    %v1386 = vpack.c.bf16 %v1360, %v1359
    %v1387 = vpack.c.bf16 %v1362, %v1361
    %v1388 = vpack.c.bf16 %v1364, %v1363
    %v1389 = vpack.c.bf16 %v1366, %v1365
    %v1390 = vpack.c.bf16 %v1368, %v1367
    %v1391 = vpack.c.bf16 %v1370, %v1369
    %v1392 = vpack.c.bf16 %v1372, %v1371
    %v1393 = vpack.c.bf16 %v1374, %v1373
    %v1394 = vpack.c.bf16 %v1376, %v1375
    %v1395 = vpack.c.bf16 %v1378, %v1377
    %v1396 = vpack.c.bf16 %v1380, %v1379
    %v1397 = vpack.c.bf16 %v1118, %v1116
    %v1398 = vpack.c.bf16 %v1123, %v1121
    %v1399 = vpack.c.bf16 %v1128, %v1126
    %v1400 = vpack.c.bf16 %v1133, %v1131
    %v1401 = vpack.c.bf16 %v1138, %v1136
    %v1402 = vpack.c.bf16 %v1143, %v1141
    %v1403 = vpack.c.bf16 %v1148, %v1146
    %v1404 = vpack.c.bf16 %v1153, %v1151
    %1405 = vmatpush.bf16.msra.mxu0 %v1404
    %1406 = vmatpush.bf16.msra.mxu0 %v1403
    %1407 = vmatpush.bf16.msra.mxu0 %v1402
    %1408 = vmatpush.bf16.msra.mxu0 %v1401
    %1409 = vmatpush.bf16.msra.mxu0 %v1400
    %1410 = vmatpush.bf16.msra.mxu0 %v1399
    %1411 = vmatpush.bf16.msra.mxu0 %v1398
    %1412 = vmatpush.bf16.msra.mxu0 %v1397
    %1413 = vmatmul.bf16.gmra.mxu0 %v1381
    %v1414 = vpop.f32.mrf.mxu0
    %v1415 = vadd.f32 0.0, %v1414
    %v1416 = vpop.f32.mrf.mxu0
    %v1417 = vadd.f32 0.0, %v1416
    %1418 = vmatmul.bf16.gmra.mxu0 %v1382
    %v1419 = vpop.f32.mrf.mxu0
    %v1420 = vadd.f32 0.0, %v1419
    %v1421 = vpop.f32.mrf.mxu0
    %v1422 = vadd.f32 0.0, %v1421
    %1423 = vmatmul.bf16.gmra.mxu0 %v1383
    %v1424 = vpop.f32.mrf.mxu0
    %v1425 = vadd.f32 0.0, %v1424
    %v1426 = vpop.f32.mrf.mxu0
    %v1427 = vadd.f32 0.0, %v1426
    %1428 = vmatmul.bf16.gmra.mxu0 %v1384
    %v1429 = vpop.f32.mrf.mxu0
    %v1430 = vadd.f32 0.0, %v1429
    %v1431 = vpop.f32.mrf.mxu0
    %v1432 = vadd.f32 0.0, %v1431
    %1433 = vmatmul.bf16.gmra.mxu0 %v1385
    %v1434 = vpop.f32.mrf.mxu0
    %v1435 = vadd.f32 0.0, %v1434
    %v1436 = vpop.f32.mrf.mxu0
    %v1437 = vadd.f32 0.0, %v1436
    %1438 = vmatmul.bf16.gmra.mxu0 %v1386
    %v1439 = vpop.f32.mrf.mxu0
    %v1440 = vadd.f32 0.0, %v1439
    %v1441 = vpop.f32.mrf.mxu0
    %v1442 = vadd.f32 0.0, %v1441
    %1443 = vmatmul.bf16.gmra.mxu0 %v1387
    %v1444 = vpop.f32.mrf.mxu0
    %v1445 = vadd.f32 0.0, %v1444
    %v1446 = vpop.f32.mrf.mxu0
    %v1447 = vadd.f32 0.0, %v1446
    %1448 = vmatmul.bf16.gmra.mxu0 %v1388
    %v1449 = vpop.f32.mrf.mxu0
    %v1450 = vadd.f32 0.0, %v1449
    %v1451 = vpop.f32.mrf.mxu0
    %v1452 = vadd.f32 0.0, %v1451
    %1453 = vmatmul.bf16.gmra.mxu0 %v1389
    %v1454 = vpop.f32.mrf.mxu0
    %v1455 = vadd.f32 0.0, %v1454
    %v1456 = vpop.f32.mrf.mxu0
    %v1457 = vadd.f32 0.0, %v1456
    %1458 = vmatmul.bf16.gmra.mxu0 %v1390
    %v1459 = vpop.f32.mrf.mxu0
    %v1460 = vadd.f32 0.0, %v1459
    %v1461 = vpop.f32.mrf.mxu0
    %v1462 = vadd.f32 0.0, %v1461
    %1463 = vmatmul.bf16.gmra.mxu0 %v1391
    %v1464 = vpop.f32.mrf.mxu0
    %v1465 = vadd.f32 0.0, %v1464
    %v1466 = vpop.f32.mrf.mxu0
    %v1467 = vadd.f32 0.0, %v1466
    %1468 = vmatmul.bf16.gmra.mxu0 %v1392
    %v1469 = vpop.f32.mrf.mxu0
    %v1470 = vadd.f32 0.0, %v1469
    %v1471 = vpop.f32.mrf.mxu0
    %v1472 = vadd.f32 0.0, %v1471
    %1473 = vmatmul.bf16.gmra.mxu0 %v1393
    %v1474 = vpop.f32.mrf.mxu0
    %v1475 = vadd.f32 0.0, %v1474
    %v1476 = vpop.f32.mrf.mxu0
    %v1477 = vadd.f32 0.0, %v1476
    %1478 = vmatmul.bf16.gmra.mxu0 %v1394
    %v1479 = vpop.f32.mrf.mxu0
    %v1480 = vadd.f32 0.0, %v1479
    %v1481 = vpop.f32.mrf.mxu0
    %v1482 = vadd.f32 0.0, %v1481
    %1483 = vmatmul.bf16.gmra.mxu0 %v1395
    %v1484 = vpop.f32.mrf.mxu0
    %v1485 = vadd.f32 0.0, %v1484
    %v1486 = vpop.f32.mrf.mxu0
    %v1487 = vadd.f32 0.0, %v1486
    %1488 = vmatmul.bf16.gmra.mxu0 %v1396
    %v1489 = vpop.f32.mrf.mxu0
    %v1490 = vadd.f32 0.0, %v1489
    %v1491 = vpop.f32.mrf.mxu0
    %v1492 = vadd.f32 0.0, %v1491
    %1493 = vdwg.mxu0
    %v1494 = vmul.f32 %v1415, %v1455
    %v1495 = vmul.f32 %v1417, %v1457
    %v1496 = vmul.f32 %v1420, %v1460
    %v1497 = vmul.f32 %v1422, %v1462
    %v1498 = vmul.f32 %v1425, %v1465
    %v1499 = vmul.f32 %v1427, %v1467
    %v1500 = vmul.f32 %v1430, %v1470
    %v1501 = vmul.f32 %v1432, %v1472
    %v1502 = vmul.f32 %v1435, %v1475
    %v1503 = vmul.f32 %v1437, %v1477
    %v1504 = vmul.f32 %v1440, %v1480
    %v1505 = vmul.f32 %v1442, %v1482
    %v1506 = vmul.f32 %v1445, %v1485
    %v1507 = vmul.f32 %v1447, %v1487
    %v1508 = vmul.f32 %v1450, %v1490
    %v1509 = vmul.f32 %v1452, %v1492
    %v1510 = vpack.c.bf16 %v1495, %v1494
    %v1511 = vpack.c.bf16 %v1497, %v1496
    %v1512 = vpack.c.bf16 %v1499, %v1498
    %v1513 = vpack.c.bf16 %v1501, %v1500
    %v1514 = vpack.c.bf16 %v1503, %v1502
    %v1515 = vpack.c.bf16 %v1505, %v1504
    %v1516 = vpack.c.bf16 %v1507, %v1506
    %v1517 = vpack.c.bf16 %v1509, %v1508
    %v1518 = vld [vmem:[#allocation2 + $0x180] sm:$0xf]
    %v1519 = vld [vmem:[#allocation2 + $0x184] sm:$0xf]
    %v1520 = vld [vmem:[#allocation2 + $0x188] sm:$0xf]
    %v1521 = vld [vmem:[#allocation2 + $0x18c] sm:$0xf]
    %v1522 = vld [vmem:[#allocation2 + $0x190] sm:$0xf]
    %v1523 = vld [vmem:[#allocation2 + $0x194] sm:$0xf]
    %v1524 = vld [vmem:[#allocation2 + $0x198] sm:$0xf]
    %v1525 = vld [vmem:[#allocation2 + $0x19c] sm:$0xf]
    %v1526 = vld [vmem:[#allocation2 + $0x1a0] sm:$0xf]
    %v1527 = vld [vmem:[#allocation2 + $0x1a4] sm:$0xf]
    %v1528 = vld [vmem:[#allocation2 + $0x1a8] sm:$0xf]
    %v1529 = vld [vmem:[#allocation2 + $0x1ac] sm:$0xf]
    %v1530 = vld [vmem:[#allocation2 + $0x1b0] sm:$0xf]
    %v1531 = vld [vmem:[#allocation2 + $0x1b4] sm:$0xf]
    %v1532 = vld [vmem:[#allocation2 + $0x1b8] sm:$0xf]
    %v1533 = vld [vmem:[#allocation2 + $0x1bc] sm:$0xf]
    %v1534 = vperm.slane %v36, 3
    %v1551 = vunpack.c.l.b16 %v1518
    %v1552 = vunpack.c.l.b16 %v1519
    %v1553 = vunpack.c.l.b16 %v1520
    %v1554 = vunpack.c.l.b16 %v1521
    %v1555 = vunpack.c.l.b16 %v1522
    %v1556 = vunpack.c.l.b16 %v1523
    %v1557 = vunpack.c.l.b16 %v1524
    %v1558 = vunpack.c.l.b16 %v1525
    %v1559 = vunpack.c.l.b16 %v1526
    %v1560 = vunpack.c.l.b16 %v1527
    %v1561 = vunpack.c.l.b16 %v1528
    %v1562 = vunpack.c.l.b16 %v1529
    %v1563 = vunpack.c.l.b16 %v1530
    %v1564 = vunpack.c.l.b16 %v1531
    %v1565 = vunpack.c.l.b16 %v1532
    %v1566 = vunpack.c.l.b16 %v1533
    %v1567 = vpack.c.b16 %v1552, %v1551
    %v1568 = vpack.c.b16 %v1554, %v1553
    %v1569 = vpack.c.b16 %v1556, %v1555
    %v1570 = vpack.c.b16 %v1558, %v1557
    %v1571 = vpack.c.b16 %v1560, %v1559
    %v1572 = vpack.c.b16 %v1562, %v1561
    %v1573 = vpack.c.b16 %v1564, %v1563
    %v1574 = vpack.c.b16 %v1566, %v1565
    %1583 = vmatpush.bf16.msra.mxu0 %v1574
    %1584 = vmatpush.bf16.msra.mxu0 %v1573
    %1585 = vmatpush.bf16.msra.mxu0 %v1572
    %1586 = vmatpush.bf16.msra.mxu0 %v1571
    %1587 = vmatpush.bf16.msra.mxu0 %v1570
    %1588 = vmatpush.bf16.msra.mxu0 %v1569
    %1589 = vmatpush.bf16.msra.mxu0 %v1568
    %1590 = vmatpush.bf16.msra.mxu0 %v1567
    %1591 = vmatmul.bf16.gmra.mxu0 %v1510
    %v1592 = vpop.f32.mrf.mxu0
    %v1593 = vadd.f32 %v1534, %v1592
    %v1594 = vpop.f32.mrf.mxu0
    %v1595 = vadd.f32 %v1534, %v1594
    %1596 = vmatmul.bf16.gmra.mxu0 %v1511
    %v1597 = vpop.f32.mrf.mxu0
    %v1598 = vadd.f32 %v1534, %v1597
    %v1599 = vpop.f32.mrf.mxu0
    %v1600 = vadd.f32 %v1534, %v1599
    %1601 = vmatmul.bf16.gmra.mxu0 %v1512
    %v1602 = vpop.f32.mrf.mxu0
    %v1603 = vadd.f32 %v1534, %v1602
    %v1604 = vpop.f32.mrf.mxu0
    %v1605 = vadd.f32 %v1534, %v1604
    %1606 = vmatmul.bf16.gmra.mxu0 %v1513
    %v1607 = vpop.f32.mrf.mxu0
    %v1608 = vadd.f32 %v1534, %v1607
    %v1609 = vpop.f32.mrf.mxu0
    %v1610 = vadd.f32 %v1534, %v1609
    %1611 = vmatmul.bf16.gmra.mxu0 %v1514
    %v1612 = vpop.f32.mrf.mxu0
    %v1613 = vadd.f32 %v1534, %v1612
    %v1614 = vpop.f32.mrf.mxu0
    %v1615 = vadd.f32 %v1534, %v1614
    %1616 = vmatmul.bf16.gmra.mxu0 %v1515
    %v1617 = vpop.f32.mrf.mxu0
    %v1618 = vadd.f32 %v1534, %v1617
    %v1619 = vpop.f32.mrf.mxu0
    %v1620 = vadd.f32 %v1534, %v1619
    %1621 = vmatmul.bf16.gmra.mxu0 %v1516
    %v1622 = vpop.f32.mrf.mxu0
    %v1623 = vadd.f32 %v1534, %v1622
    %v1624 = vpop.f32.mrf.mxu0
    %v1625 = vadd.f32 %v1534, %v1624
    %1626 = vmatmul.bf16.gmra.mxu0 %v1517
    %v1627 = vpop.f32.mrf.mxu0
    %v1628 = vadd.f32 %v1534, %v1627
    %v1629 = vpop.f32.mrf.mxu0
    %v1630 = vadd.f32 %v1534, %v1629
    %1631 = vdwg.mxu0
    %v1632 = vmax.f32 %v1593, 0.0
    %v1633 = vmax.f32 %v1595, 0.0
    %v1634 = vmax.f32 %v1598, 0.0
    %v1635 = vmax.f32 %v1600, 0.0
    %v1636 = vmax.f32 %v1603, 0.0
    %v1637 = vmax.f32 %v1605, 0.0
    %v1638 = vmax.f32 %v1608, 0.0
    %v1639 = vmax.f32 %v1610, 0.0
    %v1640 = vmax.f32 %v1613, 0.0
    %v1641 = vmax.f32 %v1615, 0.0
    %v1642 = vmax.f32 %v1618, 0.0
    %v1643 = vmax.f32 %v1620, 0.0
    %v1644 = vmax.f32 %v1623, 0.0
    %v1645 = vmax.f32 %v1625, 0.0
    %v1646 = vmax.f32 %v1628, 0.0
    %v1647 = vmax.f32 %v1630, 0.0
    %v1648 = vpack.c.bf16 %v1633, %v1632
    %v1649 = vpack.c.bf16 %v1635, %v1634
    %v1650 = vpack.c.bf16 %v1637, %v1636
    %v1651 = vpack.c.bf16 %v1639, %v1638
    %v1652 = vpack.c.bf16 %v1641, %v1640
    %v1653 = vpack.c.bf16 %v1643, %v1642
    %v1654 = vpack.c.bf16 %v1645, %v1644
    %v1655 = vpack.c.bf16 %v1647, %v1646
    %v1656 = vld [vmem:[#allocation2 + $0x1c0] sm:$0xf]
    %v1657 = vld [vmem:[#allocation2 + $0x1c4] sm:$0xf]
    %v1658 = vld [vmem:[#allocation2 + $0x1c8] sm:$0xf]
    %v1659 = vld [vmem:[#allocation2 + $0x1cc] sm:$0xf]
    %v1660 = vld [vmem:[#allocation2 + $0x1d0] sm:$0xf]
    %v1661 = vld [vmem:[#allocation2 + $0x1d4] sm:$0xf]
    %v1662 = vld [vmem:[#allocation2 + $0x1d8] sm:$0xf]
    %v1663 = vld [vmem:[#allocation2 + $0x1dc] sm:$0xf]
    %v1664 = vld [vmem:[#allocation2 + $0x1e0] sm:$0xf]
    %v1665 = vld [vmem:[#allocation2 + $0x1e4] sm:$0xf]
    %v1666 = vld [vmem:[#allocation2 + $0x1e8] sm:$0xf]
    %v1667 = vld [vmem:[#allocation2 + $0x1ec] sm:$0xf]
    %v1668 = vld [vmem:[#allocation2 + $0x1f0] sm:$0xf]
    %v1669 = vld [vmem:[#allocation2 + $0x1f4] sm:$0xf]
    %v1670 = vld [vmem:[#allocation2 + $0x1f8] sm:$0xf]
    %v1671 = vld [vmem:[#allocation2 + $0x1fc] sm:$0xf]
    %v1672 = vperm.slane %v36, 4
    %v1689 = vunpack.c.l.b16 %v1656
    %v1690 = vunpack.c.l.b16 %v1657
    %v1691 = vunpack.c.l.b16 %v1658
    %v1692 = vunpack.c.l.b16 %v1659
    %v1693 = vunpack.c.l.b16 %v1660
    %v1694 = vunpack.c.l.b16 %v1661
    %v1695 = vunpack.c.l.b16 %v1662
    %v1696 = vunpack.c.l.b16 %v1663
    %v1697 = vunpack.c.l.b16 %v1664
    %v1698 = vunpack.c.l.b16 %v1665
    %v1699 = vunpack.c.l.b16 %v1666
    %v1700 = vunpack.c.l.b16 %v1667
    %v1701 = vunpack.c.l.b16 %v1668
    %v1702 = vunpack.c.l.b16 %v1669
    %v1703 = vunpack.c.l.b16 %v1670
    %v1704 = vunpack.c.l.b16 %v1671
    %v1705 = vpack.c.b16 %v1690, %v1689
    %v1706 = vpack.c.b16 %v1692, %v1691
    %v1707 = vpack.c.b16 %v1694, %v1693
    %v1708 = vpack.c.b16 %v1696, %v1695
    %v1709 = vpack.c.b16 %v1698, %v1697
    %v1710 = vpack.c.b16 %v1700, %v1699
    %v1711 = vpack.c.b16 %v1702, %v1701
    %v1712 = vpack.c.b16 %v1704, %v1703
    %1721 = vmatpush.bf16.msra.mxu0 %v1712
    %1722 = vmatpush.bf16.msra.mxu0 %v1711
    %1723 = vmatpush.bf16.msra.mxu0 %v1710
    %1724 = vmatpush.bf16.msra.mxu0 %v1709
    %1725 = vmatpush.bf16.msra.mxu0 %v1708
    %1726 = vmatpush.bf16.msra.mxu0 %v1707
    %1727 = vmatpush.bf16.msra.mxu0 %v1706
    %1728 = vmatpush.bf16.msra.mxu0 %v1705
    %1729 = vmatmul.bf16.gmra.mxu0 %v1648
    %v1730 = vpop.f32.mrf.mxu0
    %v1731 = vadd.f32 %v1672, %v1730
    %v1732 = vpop.f32.mrf.mxu0
    %v1733 = vadd.f32 %v1672, %v1732
    %1734 = vmatmul.bf16.gmra.mxu0 %v1649
    %v1735 = vpop.f32.mrf.mxu0
    %v1736 = vadd.f32 %v1672, %v1735
    %v1737 = vpop.f32.mrf.mxu0
    %v1738 = vadd.f32 %v1672, %v1737
    %1739 = vmatmul.bf16.gmra.mxu0 %v1650
    %v1740 = vpop.f32.mrf.mxu0
    %v1741 = vadd.f32 %v1672, %v1740
    %v1742 = vpop.f32.mrf.mxu0
    %v1743 = vadd.f32 %v1672, %v1742
    %1744 = vmatmul.bf16.gmra.mxu0 %v1651
    %v1745 = vpop.f32.mrf.mxu0
    %v1746 = vadd.f32 %v1672, %v1745
    %v1747 = vpop.f32.mrf.mxu0
    %v1748 = vadd.f32 %v1672, %v1747
    %1749 = vmatmul.bf16.gmra.mxu0 %v1652
    %v1750 = vpop.f32.mrf.mxu0
    %v1751 = vadd.f32 %v1672, %v1750
    %v1752 = vpop.f32.mrf.mxu0
    %v1753 = vadd.f32 %v1672, %v1752
    %1754 = vmatmul.bf16.gmra.mxu0 %v1653
    %v1755 = vpop.f32.mrf.mxu0
    %v1756 = vadd.f32 %v1672, %v1755
    %v1757 = vpop.f32.mrf.mxu0
    %v1758 = vadd.f32 %v1672, %v1757
    %1759 = vmatmul.bf16.gmra.mxu0 %v1654
    %v1760 = vpop.f32.mrf.mxu0
    %v1761 = vadd.f32 %v1672, %v1760
    %v1762 = vpop.f32.mrf.mxu0
    %v1763 = vadd.f32 %v1672, %v1762
    %1764 = vmatmul.bf16.gmra.mxu0 %v1655
    %v1765 = vpop.f32.mrf.mxu0
    %v1766 = vadd.f32 %v1672, %v1765
    %v1767 = vpop.f32.mrf.mxu0
    %v1768 = vadd.f32 %v1672, %v1767
    %1769 = vdwg.mxu0
    %v1770 = vmax.f32 %v1731, 0.0
    %v1771 = vmax.f32 %v1733, 0.0
    %v1772 = vmax.f32 %v1736, 0.0
    %v1773 = vmax.f32 %v1738, 0.0
    %v1774 = vmax.f32 %v1741, 0.0
    %v1775 = vmax.f32 %v1743, 0.0
    %v1776 = vmax.f32 %v1746, 0.0
    %v1777 = vmax.f32 %v1748, 0.0
    %v1778 = vmax.f32 %v1751, 0.0
    %v1779 = vmax.f32 %v1753, 0.0
    %v1780 = vmax.f32 %v1756, 0.0
    %v1781 = vmax.f32 %v1758, 0.0
    %v1782 = vmax.f32 %v1761, 0.0
    %v1783 = vmax.f32 %v1763, 0.0
    %v1784 = vmax.f32 %v1766, 0.0
    %v1785 = vmax.f32 %v1768, 0.0
    %v1786 = vld [vmem:[#allocation2 + $0x200] sm:$0xf]
    %v1787 = vpack.c.bf16 %v1771, %v1770
    %v1788 = vpack.c.bf16 %v1773, %v1772
    %v1789 = vpack.c.bf16 %v1775, %v1774
    %v1790 = vpack.c.bf16 %v1777, %v1776
    %v1791 = vpack.c.bf16 %v1779, %v1778
    %v1792 = vpack.c.bf16 %v1781, %v1780
    %v1793 = vpack.c.bf16 %v1783, %v1782
    %v1794 = vpack.c.bf16 %v1785, %v1784
    %1795 = vmatpush.bf16.xpose.msra.mxu0 %v1794
    %1796 = vmatpush.bf16.xpose.msra.mxu0 %v1793
    %1797 = vmatpush.bf16.xpose.msra.mxu0 %v1792
    %1798 = vmatpush.bf16.xpose.msra.mxu0 %v1791
    %1799 = vmatpush.bf16.xpose.msra.mxu0 %v1790
    %1800 = vmatpush.bf16.xpose.msra.mxu0 %v1789
    %1801 = vmatpush.bf16.xpose.msra.mxu0 %v1788
    %1802 = vmatpush.bf16.xpose.msra.mxu0 %v1787
    %1803 = vmatmul.bf16.gmra.mxu0 %v1786
    %v1804 = vpop.f32.mrf.mxu0
    %v1805 = vadd.f32 0.0, %v1804
    %v1806 = vpop.f32.mrf.mxu0
    %1807 = vdwg.mxu0
    %1808 = vst [vmem:[%s5] sm:$0x1] %v1805
    // Predicated region
    $region26: #{sage_forward.1} parent=1 // pred_check
      _
    $region27: #{sage_forward.1} parent=1 // pred_check_branch
      %1810 = sbr.rel (0) target = $region29
    $region28: #{sage_forward.1} parent=1 // pred_region
      _
    $region29: #{sage_forward.1} parent=1 // pred_fallthru
      _
    // Predicated region
    $region30: #{sage_forward.1} parent=1 // pred_check
      _
    $region31: #{sage_forward.1} parent=1 // pred_check_branch
      %1812 = sbr.rel (0) target = $region33
    $region32: #{sage_forward.1} parent=1 // pred_region
      _
    $region33: #{sage_forward.1} parent=1 // pred_fallthru
      _
    %1813 = vsyncpa [#allocation3], 1

</llo_original>
